<compile_context>
chip_gen: v7x
topology: tpu7x:2x2x1
jax: 0.10.0
libtpu: 0.0.40
codegen_flags: <defaults>
</compile_context>

<pallas_src>
import functools

import jax
import jax.numpy as jnp
from jax.experimental import pallas as pl
from jax.experimental.pallas import tpu as pltpu


# ---------------------------------------------------------------------------
# Prep kernel (weight-shaped, mem-bound): reads (OUT,IN) tiles of weight_mu,
# weight_rho, r_w; emits BOTH MXU operand streams already transposed to (IN,OUT)
# layout and cast to the MXU feed dtype.  softplus/transpose done once per weight
# element, never inside the batch loop.
# ---------------------------------------------------------------------------
def _weight_prep_kernel(wmu_ref, rho_ref, r_ref, wmu_t_ref, pert_t_ref):
    pert = jax.nn.softplus(rho_ref[...]) * r_ref[...]          # f32 elementwise (VPU/EUP)
    wmu_t_ref[...] = wmu_ref[...].T.astype(wmu_t_ref.dtype)    # in-tile transpose (XLU)
    pert_t_ref[...] = pert.T.astype(pert_t_ref.dtype)


# ---------------------------------------------------------------------------
# Main kernel: tiled dual-matmul with K-reduction.
#   grid = (B/tm, OUT/tn, IN/tk); k (reduction) innermost.
#   Mean path accumulates into the resident f32 output block; perturbation path
#   into one f32 VMEM scratch.  Epilogue applies output_sign + fused bias row once.
# ---------------------------------------------------------------------------
def _flipout_matmul_kernel(x_ref, sgn_ref, wmu_ref, wpert_ref, osgn_ref, btot_ref,
                           o_ref, acc_pt_ref, *, dot_precision=None):
    k = pl.program_id(2)

    @pl.when(k == 0)
    def _init():
        o_ref[...] = jnp.zeros_like(o_ref)
        acc_pt_ref[...] = jnp.zeros_like(acc_pt_ref)

    x = x_ref[...]                                   # (tm, tk) in MXU feed dtype
    # Sign flip in f32 (exact: sign is +-1), cast back to the MXU feed dtype.
    xs = (x.astype(jnp.float32) * sgn_ref[...].astype(jnp.float32)).astype(x.dtype)

    o_ref[...] += jnp.dot(x, wmu_ref[...],
                          preferred_element_type=jnp.float32,
                          precision=dot_precision)
    acc_pt_ref[...] += jnp.dot(xs, wpert_ref[...],
                               preferred_element_type=jnp.float32,
                               precision=dot_precision)

    @pl.when(k == pl.num_programs(2) - 1)
    def _epilogue():
        o_ref[...] = (o_ref[...]
                      + acc_pt_ref[...] * osgn_ref[...].astype(jnp.float32)
                      + btot_ref[...])


# ---------------------------------------------------------------------------
# Wrapper helpers.
# ---------------------------------------------------------------------------
def _round_up(x, m):
    return ((x + m - 1) // m) * m


def _pick_block(dim, target, align):
    """Largest multiple of `align` that divides `dim` and is <= target."""
    best = align
    cand = align
    top = min(target, dim)
    while cand <= top:
        if dim % cand == 0:
            best = cand
        cand += align
    return min(best, dim)


def _pad2(a, rows, cols):
    r, c = a.shape
    if r == rows and c == cols:
        return a
    return jnp.pad(a, ((0, rows - r), (0, cols - c)))


def flipout_linear(x, w_mu, w_rho, b_mu, b_rho, in_sign, out_sign, r_w, r_b,
                   *, tm_target=512, tn_target=512, tk_target=1024,
                   mxu_dtype=jnp.bfloat16):
    B, IN = x.shape
    OUT = w_mu.shape[0]
    op_dtype = jnp.float32 if mxu_dtype is None else mxu_dtype
    op_isz = jnp.dtype(op_dtype).itemsize

    # ---- tiles first (target-capped, hardware-aligned), then pad dims to multiples
    # of the tiles so awkward sizes can't degrade to tiny tiles.
    tm = min(_round_up(tm_target, 8), _round_up(B, 8))
    tn = min(_round_up(tn_target, 128), _round_up(OUT, 128))
    tk = min(_round_up(tk_target, 128), _round_up(IN, 128))
    Bp = _round_up(B, tm)
    INp = _round_up(IN, tk)
    OUTp = _round_up(OUT, tn)

    # v7x has 2 TensorCores: make sure the ("parallel","parallel") sub-grid has >= 2
    # iterations when possible (halving preserves divisibility of the padded dims).
    if (Bp // tm) * (OUTp // tn) < 2:
        if tn % 256 == 0:
            tn //= 2
        elif tm % 16 == 0:
            tm //= 2

    # ---- zero-pad (exact: padded regions contribute nothing) and cast activation /
    # sign streams to the MXU feed dtype (signs are exactly +-1 -> lossless).
    x_p = _pad2(x, Bp, INp).astype(op_dtype)
    sgn_p = _pad2(in_sign, Bp, INp).astype(op_dtype)
    osgn_p = _pad2(out_sign, Bp, OUTp).astype(op_dtype)
    wmu_p = _pad2(w_mu, OUTp, INp)
    wrho_p = _pad2(w_rho, OUTp, INp)
    rw_p = _pad2(r_w, OUTp, INp)

    # ---- (1) weight prep pass: softplus(rho)*r_w and the (IN,OUT)-layout / op_dtype
    # cast of both weight streams, once per weight element.
    bo = _pick_block(OUTp, 256, 128)
    bi = _pick_block(INp, 256, 128)
    wmu_t, pert_t = pl.pallas_call(
        _weight_prep_kernel,
        out_shape=(jax.ShapeDtypeStruct((INp, OUTp), op_dtype),
                   jax.ShapeDtypeStruct((INp, OUTp), op_dtype)),
        grid_spec=pltpu.PrefetchScalarGridSpec(
            num_scalar_prefetch=0,
            grid=(OUTp // bo, INp // bi),
            in_specs=[pl.BlockSpec((bo, bi), lambda i, j: (i, j)),   # weight_mu
                      pl.BlockSpec((bo, bi), lambda i, j: (i, j)),   # weight_rho
                      pl.BlockSpec((bo, bi), lambda i, j: (i, j))],  # r_w
            out_specs=[pl.BlockSpec((bi, bo), lambda i, j: (j, i)),  # weight_mu^T
                       pl.BlockSpec((bi, bo), lambda i, j: (j, i))], # pert_w^T
        ),
        compiler_params=pltpu.CompilerParams(
            dimension_semantics=("parallel", "parallel")),
        cost_estimate=pl.CostEstimate(
            flops=2 * OUTp * INp,
            transcendentals=OUTp * INp,
            bytes_accessed=OUTp * INp * (3 * 4 + 2 * op_isz)),
    )(wmu_p, wrho_p, rw_p)

    # Fused bias row (mean bias + bias perturbation). (OUT,)-sized -> trivially cheap;
    # precomputed once so the k-loop epilogue is a single broadcast-add. Kept in f32.
    b_total = (b_mu + jax.nn.softplus(b_rho) * r_b).astype(jnp.float32).reshape(1, OUT)
    b_total = _pad2(b_total, 1, OUTp)

    grid = (Bp // tm, OUTp // tn, INp // tk)
    kernel = functools.partial(
        _flipout_matmul_kernel,
        dot_precision=(jax.lax.Precision.HIGHEST if op_dtype == jnp.float32 else None))

    out_p = pl.pallas_call(
        kernel,
        out_shape=jax.ShapeDtypeStruct((Bp, OUTp), jnp.float32),
        grid_spec=pltpu.PrefetchScalarGridSpec(
            num_scalar_prefetch=0,
            grid=grid,
            in_specs=[
                pl.BlockSpec((tm, tk), lambda i, j, k: (i, k)),   # x            (op_dtype)
                pl.BlockSpec((tm, tk), lambda i, j, k: (i, k)),   # input_sign   (op_dtype)
                pl.BlockSpec((tk, tn), lambda i, j, k: (k, j)),   # weight_mu^T  (IN,OUT)
                pl.BlockSpec((tk, tn), lambda i, j, k: (k, j)),   # pert_w^T     (IN,OUT)
                pl.BlockSpec((tm, tn), lambda i, j, k: (i, j)),   # output_sign  (op_dtype)
                pl.BlockSpec((1, tn), lambda i, j, k: (0, j)),    # fused bias row (f32)
            ],
            out_specs=pl.BlockSpec((tm, tn), lambda i, j, k: (i, j)),
            scratch_shapes=[pltpu.VMEM((tm, tn), jnp.float32)],   # perturbation accumulator
        ),
        compiler_params=pltpu.CompilerParams(
            dimension_semantics=("parallel", "parallel", "arbitrary"),
            # ~13 MiB double-buffered working set at 512/512/1024 bf16; 48 MiB leaves
            # headroom under v7x's 64 MiB physical VMEM and raises v5e's 16 MiB default.
            vmem_limit_bytes=48 * 1024 * 1024),
        cost_estimate=pl.CostEstimate(
            flops=4 * Bp * INp * OUTp,
            transcendentals=0,
            bytes_accessed=(2 * Bp * INp * op_isz + 2 * INp * OUTp * op_isz
                            + Bp * OUTp * op_isz + OUTp * 4 + Bp * OUTp * 4)),
    )(x_p, sgn_p, wmu_t, pert_t, osgn_p, b_total)

    return out_p[:B, :OUT].astype(x.dtype)


# ---------------------------------------------------------------------------
# Pure-JAX reference (mirrors the PyTorch forward).
# ---------------------------------------------------------------------------
def reference_forward(x, w_mu, w_rho, b_mu, b_rho, in_sign, out_sign, r_w, r_b):
    w_sigma = jax.nn.softplus(w_rho)
    b_sigma = jax.nn.softplus(b_rho)
    mean_out = x @ w_mu.T + b_mu
    pert = ((x * in_sign) @ (r_w * w_sigma).T) * out_sign
    return mean_out + pert + b_sigma * r_b


if __name__ == "__main__":
    # Make the f32 reference matmuls exact so the tight f32-path tolerance holds.
    jax.config.update("jax_default_matmul_precision", "highest")

    def run_case(key, B, in_features, out_features, *, mxu_dtype, atol, rtol, **kw):
        (k_x, k_wmu, k_wrho, k_bmu, k_brho,
         k_sin, k_sout, k_rw, k_rb) = jax.random.split(key, 9)

        # deterministic parameter init matching the module's __init__ statistics
        x = jax.random.normal(k_x, (B, in_features), dtype=jnp.float32)
        w_mu = 0.01 * jax.random.normal(k_wmu, (out_features, in_features), dtype=jnp.float32)
        w_rho = -5.0 + 0.01 * jax.random.normal(k_wrho, (out_features, in_features), dtype=jnp.float32)
        b_mu = 0.01 * jax.random.normal(k_bmu, (out_features,), dtype=jnp.float32)
        b_rho = -5.0 + 0.01 * jax.random.normal(k_brho, (out_features,), dtype=jnp.float32)

        # random signs: 2*bernoulli(0.5) - 1  ->  {-1, +1}
        in_sign = jnp.where(jax.random.bernoulli(k_sin, 0.5, (B, in_features)),
                            1.0, -1.0).astype(jnp.float32)
        out_sign = jnp.where(jax.random.bernoulli(k_sout, 0.5, (B, out_features)),
                             1.0, -1.0).astype(jnp.float32)

        # gaussian draws for weight / bias perturbations
        r_w = jax.random.normal(k_rw, (out_features, in_features), dtype=jnp.float32)
        r_b = jax.random.normal(k_rb, (out_features,), dtype=jnp.float32)

        out = flipout_linear(x, w_mu, w_rho, b_mu, b_rho, in_sign, out_sign, r_w, r_b,
                             mxu_dtype=mxu_dtype, **kw)
        out = jax.block_until_ready(out)

        ref = reference_forward(x, w_mu, w_rho, b_mu, b_rho, in_sign, out_sign, r_w, r_b)
        assert out.shape == (B, out_features)
        assert jnp.allclose(out, ref, atol=atol, rtol=rtol), (
            f"Pallas output mismatch vs JAX reference "
            f"(B={B}, in={in_features}, out={out_features}, mxu_dtype={mxu_dtype})")

    key = jax.random.PRNGKey(0)
    k1, k2, k3 = jax.random.split(key, 3)

    # f32-feed path: exact semantics check against the f32 reference.
    run_case(k1, B=16, in_features=1024, out_features=256,
             mxu_dtype=None, atol=1e-4, rtol=1e-4)
    # default bf16 MXU feed: exercises the K-reduction grid (2 k-steps) + epilogue.
    run_case(k2, B=16, in_features=1024, out_features=256,
             mxu_dtype=jnp.bfloat16, atol=3e-2, rtol=3e-2, tk_target=512)
    # unaligned small case: exercises the wrapper padding path (in=32, out=16 -> 128).
    run_case(k3, B=8, in_features=32, out_features=16,
             mxu_dtype=jnp.bfloat16, atol=3e-2, rtol=3e-2)

    print("KERNEL_OK")
</pallas_src>

<mosaic_0001>
module attributes {stable_mosaic.version = 11 : i64} {
  func.func @_weight_prep_kernel(%arg0: i32, %arg1: i32, %arg2: memref<256x256xf32, #tpu.memory_space<vmem>>, %arg3: memref<256x256xf32, #tpu.memory_space<vmem>>, %arg4: memref<256x256xf32, #tpu.memory_space<vmem>>, %arg5: memref<256x256xf32, #tpu.memory_space<vmem>>, %arg6: memref<256x256xf32, #tpu.memory_space<vmem>>) attributes {dimension_semantics = [#tpu.dimension_semantics<parallel>, #tpu.dimension_semantics<parallel>], iteration_bounds = array<i64: 1, 4>, scalar_prefetch = 0 : i64, scratch_operands = 0 : i64, tpu.core_type = #tpu.core_type<tc>, window_params = [{transform_indices = @transform_0, window_bounds = array<i64: 256, 256>}, {transform_indices = @transform_1, window_bounds = array<i64: 256, 256>}, {transform_indices = @transform_2, window_bounds = array<i64: 256, 256>}, {transform_indices = @transform_3, window_bounds = array<i64: 256, 256>}, {transform_indices = @transform_4, window_bounds = array<i64: 256, 256>}]} {
    %c0 = arith.constant 0 : index
    %c0_0 = arith.constant 0 : index
    %0 = vector.load %arg3[%c0, %c0_0] : memref<256x256xf32, #tpu.memory_space<vmem>>, vector<256x256xf32>
    %cst = arith.constant 0.000000e+00 : f32
    %1 = vector.broadcast %cst : f32 to vector<256x256xf32>
    %2 = arith.maximumf %0, %1 : vector<256x256xf32>
    %3 = vector.broadcast %cst : f32 to vector<256x256xf32>
    %4 = arith.subf %0, %3 : vector<256x256xf32>
    %5 = arith.cmpf one, %4, %4 : vector<256x256xf32>
    %6 = vector.broadcast %cst : f32 to vector<256x256xf32>
    %7 = arith.addf %0, %6 : vector<256x256xf32>
    %8 = math.absf %4 : vector<256x256xf32>
    %cst_1 = arith.constant 0.000000e+00 : f32
    %9 = vector.broadcast %cst_1 : f32 to vector<256x256xf32>
    %10 = arith.subf %9, %8 : vector<256x256xf32>
    %11 = math.exp %10 : vector<256x256xf32>
    %12 = math.log1p %11 : vector<256x256xf32>
    %13 = arith.addf %2, %12 : vector<256x256xf32>
    %14 = arith.select %5, %7, %13 : vector<256x256xi1>, vector<256x256xf32>
    %c0_2 = arith.constant 0 : index
    %c0_3 = arith.constant 0 : index
    %15 = vector.load %arg4[%c0_2, %c0_3] : memref<256x256xf32, #tpu.memory_space<vmem>>, vector<256x256xf32>
    %16 = arith.mulf %14, %15 : vector<256x256xf32>
    %c0_4 = arith.constant 0 : index
    %c0_5 = arith.constant 0 : index
    %17 = vector.load %arg2[%c0_4, %c0_5] : memref<256x256xf32, #tpu.memory_space<vmem>>, vector<256x256xf32>
    %18 = tpu.transpose %17, [1, 0] : vector<256x256xf32> -> vector<256x256xf32>
    %c0_6 = arith.constant 0 : index
    %c0_7 = arith.constant 0 : index
    %19 = vector.load %arg5[%c0_6, %c0_7] : memref<256x256xf32, #tpu.memory_space<vmem>>, vector<256x256xf32>
    tpu.vector_store %arg5[%c0_6, %c0_7], %18 {strides = array<i32>} : memref<256x256xf32, #tpu.memory_space<vmem>>, vector<256x256xf32>,
    %20 = tpu.transpose %16, [1, 0] : vector<256x256xf32> -> vector<256x256xf32>
    %c0_8 = arith.constant 0 : index
    %c0_9 = arith.constant 0 : index
    %21 = vector.load %arg6[%c0_8, %c0_9] : memref<256x256xf32, #tpu.memory_space<vmem>>, vector<256x256xf32>
    tpu.vector_store %arg6[%c0_8, %c0_9], %20 {strides = array<i32>} : memref<256x256xf32, #tpu.memory_space<vmem>>, vector<256x256xf32>,
    return
  }
  func.func @transform_0(%arg0: i32, %arg1: i32) -> (i32, i32) {
    %c0_i32 = arith.constant 0 : i32
    return %arg0, %arg1 : i32, i32
  }
  func.func @transform_1(%arg0: i32, %arg1: i32) -> (i32, i32) {
    %c0_i32 = arith.constant 0 : i32
    return %arg0, %arg1 : i32, i32
  }
  func.func @transform_2(%arg0: i32, %arg1: i32) -> (i32, i32) {
    %c0_i32 = arith.constant 0 : i32
    return %arg0, %arg1 : i32, i32
  }
  func.func @transform_3(%arg0: i32, %arg1: i32) -> (i32, i32) {
    %c0_i32 = arith.constant 0 : i32
    return %arg1, %arg0 : i32, i32
  }
  func.func @transform_4(%arg0: i32, %arg1: i32) -> (i32, i32) {
    %c0_i32 = arith.constant 0 : i32
    return %arg1, %arg0 : i32, i32
  }
}

</mosaic_0001>

<llo_original>
// kernel: tpu_custom_call.1
$region0: #{tpu_custom_call.1}
  #allocation0 [shape = 'u32[]', space=smem, size = 0x4, offset = 0x4, fixed_abs, tag = 'smem constant byte address 0x4 - core index']
  #allocation1 [shape = 'u32[144,128]{1,0:T(1,128)}', space=vmem, size = 0x12000, scoped, tag = 'internal scratch']
  %s0 = inlined_call_operand.hbm [shape: f32[256,1024], index: 0, kind: input, shape index: {}]
  %s1 = inlined_call_operand.hbm [shape: f32[256,1024], index: 1, kind: input, shape index: {}]
  %s2 = inlined_call_operand.hbm [shape: f32[256,1024], index: 2, kind: input, shape index: {}]
  %s3 = inlined_call_operand.hbm [shape: f32[1024,256], index: 3, kind: output, shape index: {0}]
  %s4 = inlined_call_operand.hbm [shape: f32[1024,256], index: 4, kind: output, shape index: {1}]
  %5 = xla_tuple %s3, %s4
  %s6 = sld [smem:[#allocation0]]
  $region65: #{tpu_custom_call.1} parent=0
    _
  %s8 = ssub.s32 1, %s6
  %s9 = scalar_select 0, %s8, %s6
  $region1: #{tpu_custom_call.1} parent=0
    #allocation2 [shape = 'u8[524288]{0}', space=vmem, size = 0x80000, scoped, tag = 'input window, operand 0']
    #allocation3 [shape = 's32[2]{0}', space=sflag, size = 0x8, scoped, tag = 'scoped memory for tpu_custom_call.1']
    #allocation4 [shape = 's32[2]{0}', space=sflag, size = 0x8, scoped, tag = 'scoped memory for tpu_custom_call.1']
    #allocation5 [shape = 'u8[524288]{0}', space=vmem, size = 0x80000, scoped, tag = 'input window, operand 1']
    #allocation6 [shape = 's32[2]{0}', space=sflag, size = 0x8, scoped, tag = 'scoped memory for tpu_custom_call.1']
    #allocation7 [shape = 'u8[524288]{0}', space=vmem, size = 0x80000, scoped, tag = 'input window, operand 2']
    #allocation8 [shape = 'u8[524288]{0}', space=vmem, size = 0x80000, scoped, tag = 'output window, operand 0']
    #allocation9 [shape = 'u8[524288]{0}', space=vmem, size = 0x80000, scoped, tag = 'output window, operand 1']
    #allocation10 [shape = 's32[2]{0}', space=sflag, size = 0x8, scoped, tag = 'scoped memory for tpu_custom_call.1']
    %10 = vsyncpa [#allocation3], 0
    %s11 = scalar_lea.sflag [#allocation3], 1
    %12 = vsyncpa %s11, 0
    %13 = vsyncpa [#allocation6], 0
    %s14 = scalar_lea.sflag [#allocation6], 1
    %15 = vsyncpa %s14, 0
    %16 = vsyncpa [#allocation4], 0
    %s17 = scalar_lea.sflag [#allocation4], 1
    %18 = vsyncpa %s17, 0
    %19 = vsyncpa [#allocation10], 0
    %s20 = scalar_lea.sflag [#allocation10], 1
    %21 = vsyncpa %s20, 0
    loop: start=0, step=1, limit=6
    $region2: #{tpu_custom_call.1} parent=1 // loop_pre_header
      _
    $region3: #{tpu_custom_call.1} parent=1 // loop_header
      %s23 = sphi 0, %s27
      %p24 = scmp.ge.s32.totalorder %s23, 6
      %s30 = sphi 0, %s42
      %s31 = sphi 0, %s38
      %s32 = sphi 0, %s30
      %s33 = sphi 0, %s31
      %s34 = sphi 0, %s32
      %s35 = sphi 0, %s33
      %s47 = sphi 0, %s49
      %s50 = sphi 0, %s47
      %s51 = sphi 0, %s50
      %s67 = sphi 0, %s51
      %s75 = sphi 0, %s77
      %s78 = sphi 0, %s75
      %s79 = sphi 0, %s78
      %s95 = sphi 0, %s79
      %s103 = sphi 0, %s105
      %s106 = sphi 0, %s103
      %s107 = sphi 0, %s106
      %s123 = sphi 0, %s107
      %s131 = sphi 0, %s133
      %s134 = sphi 0, %s131
      %s135 = sphi 0, %s134
      %s151 = sphi 0, %s135
      %s159 = sphi 0, %s161
      %s162 = sphi 0, %s159
      %s163 = sphi 0, %s162
      %s179 = sphi 0, %s163
    $region4: #{tpu_custom_call.1} parent=1 // loop_header_branch
      %26 = sbr.rel (%p24) target = $region8
    $region5: #{tpu_custom_call.1} parent=1 // loop_body
      %s28 = ssub.s32 %s23, 1
      %s29 = ssub.s32 %s23, 2
      %s36 = sadd.s32 1, %s31
      %p37 = scmp.ge.s32.totalorder %s36, 4
      %s38 = scalar_select %p37, 0, %s36
      %s39 = sadd.s32 1, %s30
      %s40 = scalar_select %p37, %s39, %s30
      %p41 = scmp.ge.s32.totalorder %s40, 1
      %s42 = scalar_select %p41, 0, %s40
      %s43 = ssub.s32 %s30, %s42
      %s44 = ssub.s32 %s31, %s38
      %s45 = sor.u32 %s43, %s44
      %p46 = scmp.eq.s32.totalorder %s45, 0
      %s48 = sadd.s32 %s47, 1
      %s49 = scalar_select %p46, %s47, %s48
      %p52 = pneg %p46
      %p53 = scmp.eq.s32.totalorder %s23, 3
      %p54 = por %p52, %p53
      %p55 = scmp.ne.s32.totalorder %s47, %s50
      %p56 = scmp.eq.s32.totalorder %s23, 0
      %p57 = por %p55, %p56
      %p58 = scmp.ne.s32.totalorder %s47, %s50
      %p59 = scmp.eq.s32.totalorder %s28, 3
      %p60 = por %p58, %p59
      %p61 = scmp.ne.s32.totalorder %s50, %s51
      %p62 = scmp.eq.s32.totalorder %s28, 0
      %p63 = por %p61, %p62
      %p64 = scmp.ne.s32.totalorder %s50, %s51
      %p65 = scmp.eq.s32.totalorder %s29, 3
      %p66 = por %p64, %p65
      %p68 = scmp.ne.s32.totalorder %s51, %s67
      %p69 = scmp.eq.s32.totalorder %s29, 0
      %p70 = por %p68, %p69
      %s71 = ssub.s32 %s30, %s42
      %s72 = ssub.s32 %s31, %s38
      %s73 = sor.u32 %s71, %s72
      %p74 = scmp.eq.s32.totalorder %s73, 0
      %s76 = sadd.s32 %s75, 1
      %s77 = scalar_select %p74, %s75, %s76
      %p80 = pneg %p74
      %p81 = scmp.eq.s32.totalorder %s23, 3
      %p82 = por %p80, %p81
      %p83 = scmp.ne.s32.totalorder %s75, %s78
      %p84 = scmp.eq.s32.totalorder %s23, 0
      %p85 = por %p83, %p84
      %p86 = scmp.ne.s32.totalorder %s75, %s78
      %p87 = scmp.eq.s32.totalorder %s28, 3
      %p88 = por %p86, %p87
      %p89 = scmp.ne.s32.totalorder %s78, %s79
      %p90 = scmp.eq.s32.totalorder %s28, 0
      %p91 = por %p89, %p90
      %p92 = scmp.ne.s32.totalorder %s78, %s79
      %p93 = scmp.eq.s32.totalorder %s29, 3
      %p94 = por %p92, %p93
      %p96 = scmp.ne.s32.totalorder %s79, %s95
      %p97 = scmp.eq.s32.totalorder %s29, 0
      %p98 = por %p96, %p97
      %s99 = ssub.s32 %s30, %s42
      %s100 = ssub.s32 %s31, %s38
      %s101 = sor.u32 %s99, %s100
      %p102 = scmp.eq.s32.totalorder %s101, 0
      %s104 = sadd.s32 %s103, 1
      %s105 = scalar_select %p102, %s103, %s104
      %p108 = pneg %p102
      %p109 = scmp.eq.s32.totalorder %s23, 3
      %p110 = por %p108, %p109
      %p111 = scmp.ne.s32.totalorder %s103, %s106
      %p112 = scmp.eq.s32.totalorder %s23, 0
      %p113 = por %p111, %p112
      %p114 = scmp.ne.s32.totalorder %s103, %s106
      %p115 = scmp.eq.s32.totalorder %s28, 3
      %p116 = por %p114, %p115
      %p117 = scmp.ne.s32.totalorder %s106, %s107
      %p118 = scmp.eq.s32.totalorder %s28, 0
      %p119 = por %p117, %p118
      %p120 = scmp.ne.s32.totalorder %s106, %s107
      %p121 = scmp.eq.s32.totalorder %s29, 3
      %p122 = por %p120, %p121
      %p124 = scmp.ne.s32.totalorder %s107, %s123
      %p125 = scmp.eq.s32.totalorder %s29, 0
      %p126 = por %p124, %p125
      %s127 = ssub.s32 %s31, %s38
      %s128 = ssub.s32 %s30, %s42
      %s129 = sor.u32 %s127, %s128
      %p130 = scmp.eq.s32.totalorder %s129, 0
      %s132 = sadd.s32 %s131, 1
      %s133 = scalar_select %p130, %s131, %s132
      %p136 = pneg %p130
      %p137 = scmp.eq.s32.totalorder %s23, 3
      %p138 = por %p136, %p137
      %p139 = scmp.ne.s32.totalorder %s131, %s134
      %p140 = scmp.eq.s32.totalorder %s23, 0
      %p141 = por %p139, %p140
      %p142 = scmp.ne.s32.totalorder %s131, %s134
      %p143 = scmp.eq.s32.totalorder %s28, 3
      %p144 = por %p142, %p143
      %p145 = scmp.ne.s32.totalorder %s134, %s135
      %p146 = scmp.eq.s32.totalorder %s28, 0
      %p147 = por %p145, %p146
      %p148 = scmp.ne.s32.totalorder %s134, %s135
      %p149 = scmp.eq.s32.totalorder %s29, 3
      %p150 = por %p148, %p149
      %p152 = scmp.ne.s32.totalorder %s135, %s151
      %p153 = scmp.eq.s32.totalorder %s29, 0
      %p154 = por %p152, %p153
      %s155 = ssub.s32 %s31, %s38
      %s156 = ssub.s32 %s30, %s42
      %s157 = sor.u32 %s155, %s156
      %p158 = scmp.eq.s32.totalorder %s157, 0
      %s160 = sadd.s32 %s159, 1
      %s161 = scalar_select %p158, %s159, %s160
      %p164 = pneg %p158
      %p165 = scmp.eq.s32.totalorder %s23, 3
      %p166 = por %p164, %p165
      %p167 = scmp.ne.s32.totalorder %s159, %s162
      %p168 = scmp.eq.s32.totalorder %s23, 0
      %p169 = por %p167, %p168
      %p170 = scmp.ne.s32.totalorder %s159, %s162
      %p171 = scmp.eq.s32.totalorder %s28, 3
      %p172 = por %p170, %p171
      %p173 = scmp.ne.s32.totalorder %s162, %s163
      %p174 = scmp.eq.s32.totalorder %s28, 0
      %p175 = por %p173, %p174
      %p176 = scmp.ne.s32.totalorder %s162, %s163
      %p177 = scmp.eq.s32.totalorder %s29, 3
      %p178 = por %p176, %p177
      %p180 = scmp.ne.s32.totalorder %s163, %s179
      %p181 = scmp.eq.s32.totalorder %s29, 0
      %p182 = por %p180, %p181
      %p183 = scmp.le.s32.totalorder 1, %s23
      %p184 = scmp.lt.s32.totalorder %s23, 5
      %p185 = pnand %p183, %p184
      %p186 = pneg %p185
      // Predicated region
      $region9: #{tpu_custom_call.1} parent=5 // pred_check
        _
      $region10: #{tpu_custom_call.1} parent=5 // pred_check_branch
        %188 = sbr.rel (%p185) target = $region12
      $region11: #{tpu_custom_call.1} parent=5 // pred_region
        %s189 = ssub.s32 %s23, 1
      $region12: #{tpu_custom_call.1} parent=5 // pred_fallthru
        _
      %p190 = scmp.lt.s32.totalorder %s23, 4
      // Predicated region
      $region13: #{tpu_custom_call.1} parent=5 // pred_check
        %p191 = pneg %p190
      $region14: #{tpu_custom_call.1} parent=5 // pred_check_branch
        %193 = sbr.rel (%p191) target = $region16
      $region15: #{tpu_custom_call.1} parent=5 // pred_region
        // Predicated region
        $region17: #{tpu_custom_call.1} parent=15 // pred_check
          %p194 = pneg %p57
        $region18: #{tpu_custom_call.1} parent=15 // pred_check_branch
          %196 = sbr.rel (%p194) target = $region20
        $region19: #{tpu_custom_call.1} parent=15 // pred_region
          %s197 = sand.u32 %s47, 1
          %s198 = scalar_lea.sflag [#allocation3], %s197
          %s199 = sand.u32 %s47, 1
          %s200 = smul.addr %s199, 512
          %s201 = scalar_lea.vmem [#allocation2], %s200
          %s202 = smul.u32 32, %s30
          %s203 = smul.u32 2, %s31
          %s205 = ssub.s32 8192, 8192
          %206 = vsyncadd %s198, %s205
          %s207 = smul.addr %s202, 8
          %s208 = sadd.s32 %s203, %s207
          %s209 = smul.addr %s208, 128
          %s210 = scalar_lea.hbm %s0, %s209
          %s211 = sshll.u32 %s201, 4
          %s212 = int_to_ptr.vmem [resolvable:$true] %s211
          %217 = dma.hbm_to_vmem [thread:$0]  %s210, 8192, %s212, %s198, 1024, 256, 16
        $region20: #{tpu_custom_call.1} parent=15 // pred_fallthru
          _
        // Predicated region
        $region21: #{tpu_custom_call.1} parent=15 // pred_check
          %p218 = pneg %p85
        $region22: #{tpu_custom_call.1} parent=15 // pred_check_branch
          %220 = sbr.rel (%p218) target = $region24
        $region23: #{tpu_custom_call.1} parent=15 // pred_region
          %s221 = sand.u32 %s23, 1
          %s222 = scalar_lea.sflag [#allocation6], %s221
          %s223 = sand.u32 %s75, 1
          %s224 = smul.addr %s223, 512
          %s225 = scalar_lea.vmem [#allocation5], %s224
          %s226 = smul.u32 32, %s30
          %s227 = smul.u32 2, %s31
          %s229 = ssub.s32 8192, 8192
          %230 = vsyncadd %s222, %s229
          %s231 = smul.addr %s226, 8
          %s232 = sadd.s32 %s227, %s231
          %s233 = smul.addr %s232, 128
          %s234 = scalar_lea.hbm %s1, %s233
          %s235 = sshll.u32 %s225, 4
          %s236 = int_to_ptr.vmem [resolvable:$true] %s235
          %241 = dma.hbm_to_vmem [thread:$0]  %s234, 8192, %s236, %s222, 1024, 256, 16
        $region24: #{tpu_custom_call.1} parent=15 // pred_fallthru
          _
        // Predicated region
        $region25: #{tpu_custom_call.1} parent=15 // pred_check
          %p242 = pneg %p113
        $region26: #{tpu_custom_call.1} parent=15 // pred_check_branch
          %244 = sbr.rel (%p242) target = $region28
        $region27: #{tpu_custom_call.1} parent=15 // pred_region
          %s245 = sand.u32 %s23, 1
          %s246 = scalar_lea.sflag [#allocation6], %s245
          %s247 = sand.u32 %s103, 1
          %s248 = smul.addr %s247, 512
          %s249 = scalar_lea.vmem [#allocation7], %s248
          %s250 = smul.u32 32, %s30
          %s251 = smul.u32 2, %s31
          %s253 = ssub.s32 8192, 8192
          %254 = vsyncadd %s246, %s253
          %s255 = smul.addr %s250, 8
          %s256 = sadd.s32 %s251, %s255
          %s257 = smul.addr %s256, 128
          %s258 = scalar_lea.hbm %s2, %s257
          %s259 = sshll.u32 %s249, 4
          %s260 = int_to_ptr.vmem [resolvable:$true] %s259
          %265 = dma.hbm_to_vmem [thread:$0]  %s258, 8192, %s260, %s246, 1024, 256, 16
        $region28: #{tpu_custom_call.1} parent=15 // pred_fallthru
          _
      $region16: #{tpu_custom_call.1} parent=5 // pred_fallthru
        _
      %p266 = scmp.le.s32.totalorder 1, %s23
      %p267 = scmp.lt.s32.totalorder %s23, 5
      %p268 = pnand %p266, %p267
      %p269 = pneg %p268
      // Predicated region
      $region29: #{tpu_custom_call.1} parent=5 // pred_check
        _
      $region30: #{tpu_custom_call.1} parent=5 // pred_check_branch
        %271 = sbr.rel (%p268) target = $region32
      $region31: #{tpu_custom_call.1} parent=5 // pred_region
        %s272 = ssub.s32 %s23, 1
        %s273 = sand.u32 %s50, 1
        %s274 = scalar_lea.sflag [#allocation3], %s273
        %s275 = sand.u32 %s50, 1
        %s276 = smul.addr %s275, 512
        %s277 = scalar_lea.vmem [#allocation2], %s276
        // Predicated region
        $region33: #{tpu_custom_call.1} parent=31 // pred_check
          %p278 = pneg %p63
        $region34: #{tpu_custom_call.1} parent=31 // pred_check_branch
          %280 = sbr.rel (%p278) target = $region36
        $region35: #{tpu_custom_call.1} parent=31 // pred_region
          %281 = dma.done %s274, 8192
        $region36: #{tpu_custom_call.1} parent=31 // pred_fallthru
          _
        %s282 = sand.u32 %s28, 1
        %s283 = scalar_lea.sflag [#allocation6], %s282
        %s284 = sand.u32 %s78, 1
        %s285 = smul.addr %s284, 512
        %s286 = scalar_lea.vmem [#allocation5], %s285
        // Predicated region
        $region37: #{tpu_custom_call.1} parent=31 // pred_check
          %p287 = pneg %p91
        $region38: #{tpu_custom_call.1} parent=31 // pred_check_branch
          %289 = sbr.rel (%p287) target = $region40
        $region39: #{tpu_custom_call.1} parent=31 // pred_region
          %290 = dma.done %s283, 8192
        $region40: #{tpu_custom_call.1} parent=31 // pred_fallthru
          _
        %s291 = sand.u32 %s28, 1
        %s292 = scalar_lea.sflag [#allocation6], %s291
        %s293 = sand.u32 %s106, 1
        %s294 = smul.addr %s293, 512
        %s295 = scalar_lea.vmem [#allocation7], %s294
        // Predicated region
        $region41: #{tpu_custom_call.1} parent=31 // pred_check
          %p296 = pneg %p119
        $region42: #{tpu_custom_call.1} parent=31 // pred_check_branch
          %298 = sbr.rel (%p296) target = $region44
        $region43: #{tpu_custom_call.1} parent=31 // pred_region
          %299 = dma.done %s292, 8192
        $region44: #{tpu_custom_call.1} parent=31 // pred_fallthru
          _
        %s300 = sand.u32 %s50, 1
        %s301 = scalar_lea.sflag [#allocation3], %s300
        %s302 = sand.u32 %s50, 1
        %s303 = smul.addr %s302, 512
        %s304 = scalar_lea.vmem [#allocation2], %s303
        %p305 = pneg %p63
        %p306 = pneg %p60
        %s307 = sand.u32 %s28, 1
        %s308 = scalar_lea.sflag [#allocation6], %s307
        %s309 = sand.u32 %s78, 1
        %s310 = smul.addr %s309, 512
        %s311 = scalar_lea.vmem [#allocation5], %s310
        %p312 = pneg %p91
        %p313 = pneg %p88
        %s314 = sand.u32 %s28, 1
        %s315 = scalar_lea.sflag [#allocation6], %s314
        %s316 = sand.u32 %s106, 1
        %s317 = smul.addr %s316, 512
        %s318 = scalar_lea.vmem [#allocation7], %s317
        %p319 = pneg %p119
        %p320 = pneg %p116
        %p321 = pneg %p147
        %p322 = pneg %p144
        %s323 = sand.u32 %s134, 1
        %s324 = scalar_lea.sflag [#allocation4], %s323
        %s325 = sand.u32 %s134, 1
        %s326 = smul.addr %s325, 512
        %s327 = scalar_lea.vmem [#allocation8], %s326
        %p328 = pneg %p175
        %p329 = pneg %p172
        %s330 = sand.u32 %s162, 1
        %s331 = scalar_lea.sflag [#allocation10], %s330
        %s332 = sand.u32 %s162, 1
        %s333 = smul.addr %s332, 512
        %s334 = scalar_lea.vmem [#allocation9], %s333
        %s335 = smul.u32 32, %s32
        %s336 = smul.u32 2, %s33
        %s337 = smul.u32 32, %s32
        %s338 = smul.u32 2, %s33
        %s339 = smul.u32 32, %s32
        %s340 = smul.u32 2, %s33
        %s341 = smul.u32 32, %s33
        %s342 = smul.u32 2, %s32
        %s343 = smul.u32 32, %s33
        %s344 = smul.u32 2, %s32
        %v345 = vld [vmem:[%s286] sm:$0xff]
        %v346 = vld [vmem:[%s286 + $0x8] sm:$0xff]
        %v347 = vld [vmem:[%s286 + $0x10] sm:$0xff]
        %v348 = vld [vmem:[%s286 + $0x18] sm:$0xff]
        %v349 = vld [vmem:[%s286 + $0x20] sm:$0xff]
        %v350 = vld [vmem:[%s286 + $0x28] sm:$0xff]
        %v351 = vld [vmem:[%s286 + $0x30] sm:$0xff]
        %v352 = vld [vmem:[%s286 + $0x38] sm:$0xff]
        %v353 = vld [vmem:[%s286 + $0x40] sm:$0xff]
        %v354 = vld [vmem:[%s286 + $0x48] sm:$0xff]
        %v355 = vld [vmem:[%s286 + $0x50] sm:$0xff]
        %v356 = vld [vmem:[%s286 + $0x58] sm:$0xff]
        %v357 = vld [vmem:[%s286 + $0x60] sm:$0xff]
        %v358 = vld [vmem:[%s286 + $0x68] sm:$0xff]
        %v359 = vld [vmem:[%s286 + $0x70] sm:$0xff]
        %v360 = vld [vmem:[%s286 + $0x78] sm:$0xff]
        %v361 = vld [vmem:[%s286 + $0x80] sm:$0xff]
        %v362 = vld [vmem:[%s286 + $0x88] sm:$0xff]
        %v363 = vld [vmem:[%s286 + $0x90] sm:$0xff]
        %v364 = vld [vmem:[%s286 + $0x98] sm:$0xff]
        %v365 = vld [vmem:[%s286 + $0xa0] sm:$0xff]
        %v366 = vld [vmem:[%s286 + $0xa8] sm:$0xff]
        %v367 = vld [vmem:[%s286 + $0xb0] sm:$0xff]
        %v368 = vld [vmem:[%s286 + $0xb8] sm:$0xff]
        %v369 = vld [vmem:[%s286 + $0xc0] sm:$0xff]
        %v370 = vld [vmem:[%s286 + $0xc8] sm:$0xff]
        %v371 = vld [vmem:[%s286 + $0xd0] sm:$0xff]
        %v372 = vld [vmem:[%s286 + $0xd8] sm:$0xff]
        %v373 = vld [vmem:[%s286 + $0xe0] sm:$0xff]
        %v374 = vld [vmem:[%s286 + $0xe8] sm:$0xff]
        %v375 = vld [vmem:[%s286 + $0xf0] sm:$0xff]
        %v376 = vld [vmem:[%s286 + $0xf8] sm:$0xff]
        %v377 = vld [vmem:[%s286 + $0x100] sm:$0xff]
        %v378 = vld [vmem:[%s286 + $0x108] sm:$0xff]
        %v379 = vld [vmem:[%s286 + $0x110] sm:$0xff]
        %v380 = vld [vmem:[%s286 + $0x118] sm:$0xff]
        %v381 = vld [vmem:[%s286 + $0x120] sm:$0xff]
        %v382 = vld [vmem:[%s286 + $0x128] sm:$0xff]
        %v383 = vld [vmem:[%s286 + $0x130] sm:$0xff]
        %v384 = vld [vmem:[%s286 + $0x138] sm:$0xff]
        %v385 = vld [vmem:[%s286 + $0x140] sm:$0xff]
        %v386 = vld [vmem:[%s286 + $0x148] sm:$0xff]
        %v387 = vld [vmem:[%s286 + $0x150] sm:$0xff]
        %v388 = vld [vmem:[%s286 + $0x158] sm:$0xff]
        %v389 = vld [vmem:[%s286 + $0x160] sm:$0xff]
        %v390 = vld [vmem:[%s286 + $0x168] sm:$0xff]
        %v391 = vld [vmem:[%s286 + $0x170] sm:$0xff]
        %v392 = vld [vmem:[%s286 + $0x178] sm:$0xff]
        %v393 = vld [vmem:[%s286 + $0x180] sm:$0xff]
        %v394 = vld [vmem:[%s286 + $0x188] sm:$0xff]
        %v395 = vld [vmem:[%s286 + $0x190] sm:$0xff]
        %v396 = vld [vmem:[%s286 + $0x198] sm:$0xff]
        %v397 = vld [vmem:[%s286 + $0x1a0] sm:$0xff]
        %v398 = vld [vmem:[%s286 + $0x1a8] sm:$0xff]
        %v399 = vld [vmem:[%s286 + $0x1b0] sm:$0xff]
        %v400 = vld [vmem:[%s286 + $0x1b8] sm:$0xff]
        %v401 = vld [vmem:[%s286 + $0x1c0] sm:$0xff]
        %v402 = vld [vmem:[%s286 + $0x1c8] sm:$0xff]
        %v403 = vld [vmem:[%s286 + $0x1d0] sm:$0xff]
        %v404 = vld [vmem:[%s286 + $0x1d8] sm:$0xff]
        %v405 = vld [vmem:[%s286 + $0x1e0] sm:$0xff]
        %v406 = vld [vmem:[%s286 + $0x1e8] sm:$0xff]
        %v407 = vld [vmem:[%s286 + $0x1f0] sm:$0xff]
        %v408 = vld [vmem:[%s286 + $0x1f8] sm:$0xff]
        %v409 = vmax.f32 %v345, 0.0
        %v410 = vmax.f32 %v346, 0.0
        %v411 = vmax.f32 %v347, 0.0
        %v412 = vmax.f32 %v348, 0.0
        %v413 = vmax.f32 %v349, 0.0
        %v414 = vmax.f32 %v350, 0.0
        %v415 = vmax.f32 %v351, 0.0
        %v416 = vmax.f32 %v352, 0.0
        %v417 = vmax.f32 %v353, 0.0
        %v418 = vmax.f32 %v354, 0.0
        %v419 = vmax.f32 %v355, 0.0
        %v420 = vmax.f32 %v356, 0.0
        %v421 = vmax.f32 %v357, 0.0
        %v422 = vmax.f32 %v358, 0.0
        %v423 = vmax.f32 %v359, 0.0
        %v424 = vmax.f32 %v360, 0.0
        %v425 = vmax.f32 %v361, 0.0
        %v426 = vmax.f32 %v362, 0.0
        %v427 = vmax.f32 %v363, 0.0
        %v428 = vmax.f32 %v364, 0.0
        %v429 = vmax.f32 %v365, 0.0
        %v430 = vmax.f32 %v366, 0.0
        %v431 = vmax.f32 %v367, 0.0
        %v432 = vmax.f32 %v368, 0.0
        %v433 = vmax.f32 %v369, 0.0
        %v434 = vmax.f32 %v370, 0.0
        %v435 = vmax.f32 %v371, 0.0
        %v436 = vmax.f32 %v372, 0.0
        %v437 = vmax.f32 %v373, 0.0
        %v438 = vmax.f32 %v374, 0.0
        %v439 = vmax.f32 %v375, 0.0
        %v440 = vmax.f32 %v376, 0.0
        %v441 = vmax.f32 %v377, 0.0
        %v442 = vmax.f32 %v378, 0.0
        %v443 = vmax.f32 %v379, 0.0
        %v444 = vmax.f32 %v380, 0.0
        %v445 = vmax.f32 %v381, 0.0
        %v446 = vmax.f32 %v382, 0.0
        %v447 = vmax.f32 %v383, 0.0
        %v448 = vmax.f32 %v384, 0.0
        %v449 = vmax.f32 %v385, 0.0
        %v450 = vmax.f32 %v386, 0.0
        %v451 = vmax.f32 %v387, 0.0
        %v452 = vmax.f32 %v388, 0.0
        %v453 = vmax.f32 %v389, 0.0
        %v454 = vmax.f32 %v390, 0.0
        %v455 = vmax.f32 %v391, 0.0
        %v456 = vmax.f32 %v392, 0.0
        %v457 = vmax.f32 %v393, 0.0
        %v458 = vmax.f32 %v394, 0.0
        %v459 = vmax.f32 %v395, 0.0
        %v460 = vmax.f32 %v396, 0.0
        %v461 = vmax.f32 %v397, 0.0
        %v462 = vmax.f32 %v398, 0.0
        %v463 = vmax.f32 %v399, 0.0
        %v464 = vmax.f32 %v400, 0.0
        %v465 = vmax.f32 %v401, 0.0
        %v466 = vmax.f32 %v402, 0.0
        %v467 = vmax.f32 %v403, 0.0
        %v468 = vmax.f32 %v404, 0.0
        %v469 = vmax.f32 %v405, 0.0
        %v470 = vmax.f32 %v406, 0.0
        %v471 = vmax.f32 %v407, 0.0
        %v472 = vmax.f32 %v408, 0.0
        %vm473 = vcmp.ne.f32.partialorder %v345, %v345
        %vm474 = vcmp.ne.f32.partialorder %v346, %v346
        %vm475 = vcmp.ne.f32.partialorder %v347, %v347
        %vm476 = vcmp.ne.f32.partialorder %v348, %v348
        %vm477 = vcmp.ne.f32.partialorder %v349, %v349
        %vm478 = vcmp.ne.f32.partialorder %v350, %v350
        %vm479 = vcmp.ne.f32.partialorder %v351, %v351
        %vm480 = vcmp.ne.f32.partialorder %v352, %v352
        %vm481 = vcmp.ne.f32.partialorder %v353, %v353
        %vm482 = vcmp.ne.f32.partialorder %v354, %v354
        %vm483 = vcmp.ne.f32.partialorder %v355, %v355
        %vm484 = vcmp.ne.f32.partialorder %v356, %v356
        %vm485 = vcmp.ne.f32.partialorder %v357, %v357
        %vm486 = vcmp.ne.f32.partialorder %v358, %v358
        %vm487 = vcmp.ne.f32.partialorder %v359, %v359
        %vm488 = vcmp.ne.f32.partialorder %v360, %v360
        %vm489 = vcmp.ne.f32.partialorder %v361, %v361
        %vm490 = vcmp.ne.f32.partialorder %v362, %v362
        %vm491 = vcmp.ne.f32.partialorder %v363, %v363
        %vm492 = vcmp.ne.f32.partialorder %v364, %v364
        %vm493 = vcmp.ne.f32.partialorder %v365, %v365
        %vm494 = vcmp.ne.f32.partialorder %v366, %v366
        %vm495 = vcmp.ne.f32.partialorder %v367, %v367
        %vm496 = vcmp.ne.f32.partialorder %v368, %v368
        %vm497 = vcmp.ne.f32.partialorder %v369, %v369
        %vm498 = vcmp.ne.f32.partialorder %v370, %v370
        %vm499 = vcmp.ne.f32.partialorder %v371, %v371
        %vm500 = vcmp.ne.f32.partialorder %v372, %v372
        %vm501 = vcmp.ne.f32.partialorder %v373, %v373
        %vm502 = vcmp.ne.f32.partialorder %v374, %v374
        %vm503 = vcmp.ne.f32.partialorder %v375, %v375
        %vm504 = vcmp.ne.f32.partialorder %v376, %v376
        %vm505 = vcmp.ne.f32.partialorder %v377, %v377
        %vm506 = vcmp.ne.f32.partialorder %v378, %v378
        %vm507 = vcmp.ne.f32.partialorder %v379, %v379
        %vm508 = vcmp.ne.f32.partialorder %v380, %v380
        %vm509 = vcmp.ne.f32.partialorder %v381, %v381
        %vm510 = vcmp.ne.f32.partialorder %v382, %v382
        %vm511 = vcmp.ne.f32.partialorder %v383, %v383
        %vm512 = vcmp.ne.f32.partialorder %v384, %v384
        %vm513 = vcmp.ne.f32.partialorder %v385, %v385
        %vm514 = vcmp.ne.f32.partialorder %v386, %v386
        %vm515 = vcmp.ne.f32.partialorder %v387, %v387
        %vm516 = vcmp.ne.f32.partialorder %v388, %v388
        %vm517 = vcmp.ne.f32.partialorder %v389, %v389
        %vm518 = vcmp.ne.f32.partialorder %v390, %v390
        %vm519 = vcmp.ne.f32.partialorder %v391, %v391
        %vm520 = vcmp.ne.f32.partialorder %v392, %v392
        %vm521 = vcmp.ne.f32.partialorder %v393, %v393
        %vm522 = vcmp.ne.f32.partialorder %v394, %v394
        %vm523 = vcmp.ne.f32.partialorder %v395, %v395
        %vm524 = vcmp.ne.f32.partialorder %v396, %v396
        %vm525 = vcmp.ne.f32.partialorder %v397, %v397
        %vm526 = vcmp.ne.f32.partialorder %v398, %v398
        %vm527 = vcmp.ne.f32.partialorder %v399, %v399
        %vm528 = vcmp.ne.f32.partialorder %v400, %v400
        %vm529 = vcmp.ne.f32.partialorder %v401, %v401
        %vm530 = vcmp.ne.f32.partialorder %v402, %v402
        %vm531 = vcmp.ne.f32.partialorder %v403, %v403
        %vm532 = vcmp.ne.f32.partialorder %v404, %v404
        %vm533 = vcmp.ne.f32.partialorder %v405, %v405
        %vm534 = vcmp.ne.f32.partialorder %v406, %v406
        %vm535 = vcmp.ne.f32.partialorder %v407, %v407
        %vm536 = vcmp.ne.f32.partialorder %v408, %v408
        %v537 = vadd.f32 %v345, 0.0
        %v538 = vadd.f32 %v346, 0.0
        %v539 = vadd.f32 %v347, 0.0
        %v540 = vadd.f32 %v348, 0.0
        %v541 = vadd.f32 %v349, 0.0
        %v542 = vadd.f32 %v350, 0.0
        %v543 = vadd.f32 %v351, 0.0
        %v544 = vadd.f32 %v352, 0.0
        %v545 = vadd.f32 %v353, 0.0
        %v546 = vadd.f32 %v354, 0.0
        %v547 = vadd.f32 %v355, 0.0
        %v548 = vadd.f32 %v356, 0.0
        %v549 = vadd.f32 %v357, 0.0
        %v550 = vadd.f32 %v358, 0.0
        %v551 = vadd.f32 %v359, 0.0
        %v552 = vadd.f32 %v360, 0.0
        %v553 = vadd.f32 %v361, 0.0
        %v554 = vadd.f32 %v362, 0.0
        %v555 = vadd.f32 %v363, 0.0
        %v556 = vadd.f32 %v364, 0.0
        %v557 = vadd.f32 %v365, 0.0
        %v558 = vadd.f32 %v366, 0.0
        %v559 = vadd.f32 %v367, 0.0
        %v560 = vadd.f32 %v368, 0.0
        %v561 = vadd.f32 %v369, 0.0
        %v562 = vadd.f32 %v370, 0.0
        %v563 = vadd.f32 %v371, 0.0
        %v564 = vadd.f32 %v372, 0.0
        %v565 = vadd.f32 %v373, 0.0
        %v566 = vadd.f32 %v374, 0.0
        %v567 = vadd.f32 %v375, 0.0
        %v568 = vadd.f32 %v376, 0.0
        %v569 = vadd.f32 %v377, 0.0
        %v570 = vadd.f32 %v378, 0.0
        %v571 = vadd.f32 %v379, 0.0
        %v572 = vadd.f32 %v380, 0.0
        %v573 = vadd.f32 %v381, 0.0
        %v574 = vadd.f32 %v382, 0.0
        %v575 = vadd.f32 %v383, 0.0
        %v576 = vadd.f32 %v384, 0.0
        %v577 = vadd.f32 %v385, 0.0
        %v578 = vadd.f32 %v386, 0.0
        %v579 = vadd.f32 %v387, 0.0
        %v580 = vadd.f32 %v388, 0.0
        %v581 = vadd.f32 %v389, 0.0
        %v582 = vadd.f32 %v390, 0.0
        %v583 = vadd.f32 %v391, 0.0
        %v584 = vadd.f32 %v392, 0.0
        %v585 = vadd.f32 %v393, 0.0
        %v586 = vadd.f32 %v394, 0.0
        %v587 = vadd.f32 %v395, 0.0
        %v588 = vadd.f32 %v396, 0.0
        %v589 = vadd.f32 %v397, 0.0
        %v590 = vadd.f32 %v398, 0.0
        %v591 = vadd.f32 %v399, 0.0
        %v592 = vadd.f32 %v400, 0.0
        %v593 = vadd.f32 %v401, 0.0
        %v594 = vadd.f32 %v402, 0.0
        %v595 = vadd.f32 %v403, 0.0
        %v596 = vadd.f32 %v404, 0.0
        %v597 = vadd.f32 %v405, 0.0
        %v598 = vadd.f32 %v406, 0.0
        %v599 = vadd.f32 %v407, 0.0
        %v600 = vadd.f32 %v408, 0.0
        %v601 = vand.u32 2147483647, %v345
        %v602 = vand.u32 2147483647, %v346
        %v603 = vand.u32 2147483647, %v347
        %v604 = vand.u32 2147483647, %v348
        %v605 = vand.u32 2147483647, %v349
        %v606 = vand.u32 2147483647, %v350
        %v607 = vand.u32 2147483647, %v351
        %v608 = vand.u32 2147483647, %v352
        %v609 = vand.u32 2147483647, %v353
        %v610 = vand.u32 2147483647, %v354
        %v611 = vand.u32 2147483647, %v355
        %v612 = vand.u32 2147483647, %v356
        %v613 = vand.u32 2147483647, %v357
        %v614 = vand.u32 2147483647, %v358
        %v615 = vand.u32 2147483647, %v359
        %v616 = vand.u32 2147483647, %v360
        %v617 = vand.u32 2147483647, %v361
        %v618 = vand.u32 2147483647, %v362
        %v619 = vand.u32 2147483647, %v363
        %v620 = vand.u32 2147483647, %v364
        %v621 = vand.u32 2147483647, %v365
        %v622 = vand.u32 2147483647, %v366
        %v623 = vand.u32 2147483647, %v367
        %v624 = vand.u32 2147483647, %v368
        %v625 = vand.u32 2147483647, %v369
        %v626 = vand.u32 2147483647, %v370
        %v627 = vand.u32 2147483647, %v371
        %v628 = vand.u32 2147483647, %v372
        %v629 = vand.u32 2147483647, %v373
        %v630 = vand.u32 2147483647, %v374
        %v631 = vand.u32 2147483647, %v375
        %v632 = vand.u32 2147483647, %v376
        %v633 = vand.u32 2147483647, %v377
        %v634 = vand.u32 2147483647, %v378
        %v635 = vand.u32 2147483647, %v379
        %v636 = vand.u32 2147483647, %v380
        %v637 = vand.u32 2147483647, %v381
        %v638 = vand.u32 2147483647, %v382
        %v639 = vand.u32 2147483647, %v383
        %v640 = vand.u32 2147483647, %v384
        %v641 = vand.u32 2147483647, %v385
        %v642 = vand.u32 2147483647, %v386
        %v643 = vand.u32 2147483647, %v387
        %v644 = vand.u32 2147483647, %v388
        %v645 = vand.u32 2147483647, %v389
        %v646 = vand.u32 2147483647, %v390
        %v647 = vand.u32 2147483647, %v391
        %v648 = vand.u32 2147483647, %v392
        %v649 = vand.u32 2147483647, %v393
        %v650 = vand.u32 2147483647, %v394
        %v651 = vand.u32 2147483647, %v395
        %v652 = vand.u32 2147483647, %v396
        %v653 = vand.u32 2147483647, %v397
        %v654 = vand.u32 2147483647, %v398
        %v655 = vand.u32 2147483647, %v399
        %v656 = vand.u32 2147483647, %v400
        %v657 = vand.u32 2147483647, %v401
        %v658 = vand.u32 2147483647, %v402
        %v659 = vand.u32 2147483647, %v403
        %v660 = vand.u32 2147483647, %v404
        %v661 = vand.u32 2147483647, %v405
        %v662 = vand.u32 2147483647, %v406
        %v663 = vand.u32 2147483647, %v407
        %v664 = vand.u32 2147483647, %v408
        %v665 = vsub.f32 0.0, %v601
        %v666 = vsub.f32 0.0, %v602
        %v667 = vsub.f32 0.0, %v603
        %v668 = vsub.f32 0.0, %v604
        %v669 = vsub.f32 0.0, %v605
        %v670 = vsub.f32 0.0, %v606
        %v671 = vsub.f32 0.0, %v607
        %v672 = vsub.f32 0.0, %v608
        %v673 = vsub.f32 0.0, %v609
        %v674 = vsub.f32 0.0, %v610
        %v675 = vsub.f32 0.0, %v611
        %v676 = vsub.f32 0.0, %v612
        %v677 = vsub.f32 0.0, %v613
        %v678 = vsub.f32 0.0, %v614
        %v679 = vsub.f32 0.0, %v615
        %v680 = vsub.f32 0.0, %v616
        %v681 = vsub.f32 0.0, %v617
        %v682 = vsub.f32 0.0, %v618
        %v683 = vsub.f32 0.0, %v619
        %v684 = vsub.f32 0.0, %v620
        %v685 = vsub.f32 0.0, %v621
        %v686 = vsub.f32 0.0, %v622
        %v687 = vsub.f32 0.0, %v623
        %v688 = vsub.f32 0.0, %v624
        %v689 = vsub.f32 0.0, %v625
        %v690 = vsub.f32 0.0, %v626
        %v691 = vsub.f32 0.0, %v627
        %v692 = vsub.f32 0.0, %v628
        %v693 = vsub.f32 0.0, %v629
        %v694 = vsub.f32 0.0, %v630
        %v695 = vsub.f32 0.0, %v631
        %v696 = vsub.f32 0.0, %v632
        %v697 = vsub.f32 0.0, %v633
        %v698 = vsub.f32 0.0, %v634
        %v699 = vsub.f32 0.0, %v635
        %v700 = vsub.f32 0.0, %v636
        %v701 = vsub.f32 0.0, %v637
        %v702 = vsub.f32 0.0, %v638
        %v703 = vsub.f32 0.0, %v639
        %v704 = vsub.f32 0.0, %v640
        %v705 = vsub.f32 0.0, %v641
        %v706 = vsub.f32 0.0, %v642
        %v707 = vsub.f32 0.0, %v643
        %v708 = vsub.f32 0.0, %v644
        %v709 = vsub.f32 0.0, %v645
        %v710 = vsub.f32 0.0, %v646
        %v711 = vsub.f32 0.0, %v647
        %v712 = vsub.f32 0.0, %v648
        %v713 = vsub.f32 0.0, %v649
        %v714 = vsub.f32 0.0, %v650
        %v715 = vsub.f32 0.0, %v651
        %v716 = vsub.f32 0.0, %v652
        %v717 = vsub.f32 0.0, %v653
        %v718 = vsub.f32 0.0, %v654
        %v719 = vsub.f32 0.0, %v655
        %v720 = vsub.f32 0.0, %v656
        %v721 = vsub.f32 0.0, %v657
        %v722 = vsub.f32 0.0, %v658
        %v723 = vsub.f32 0.0, %v659
        %v724 = vsub.f32 0.0, %v660
        %v725 = vsub.f32 0.0, %v661
        %v726 = vsub.f32 0.0, %v662
        %v727 = vsub.f32 0.0, %v663
        %v728 = vsub.f32 0.0, %v664
        %v729 = vmul.f32 %v665, 1.442695
        %v730 = vpow.pop %v729
        %v731 = vmul.f32 %v666, 1.442695
        %v732 = vpow.pop %v731
        %v733 = vmul.f32 %v667, 1.442695
        %v734 = vpow.pop %v733
        %v735 = vmul.f32 %v668, 1.442695
        %v736 = vpow.pop %v735
        %v737 = vmul.f32 %v669, 1.442695
        %v738 = vpow.pop %v737
        %v739 = vmul.f32 %v670, 1.442695
        %v740 = vpow.pop %v739
        %v741 = vmul.f32 %v671, 1.442695
        %v742 = vpow.pop %v741
        %v743 = vmul.f32 %v672, 1.442695
        %v744 = vpow.pop %v743
        %v745 = vmul.f32 %v673, 1.442695
        %v746 = vpow.pop %v745
        %v747 = vmul.f32 %v674, 1.442695
        %v748 = vpow.pop %v747
        %v749 = vmul.f32 %v675, 1.442695
        %v750 = vpow.pop %v749
        %v751 = vmul.f32 %v676, 1.442695
        %v752 = vpow.pop %v751
        %v753 = vmul.f32 %v677, 1.442695
        %v754 = vpow.pop %v753
        %v755 = vmul.f32 %v678, 1.442695
        %v756 = vpow.pop %v755
        %v757 = vmul.f32 %v679, 1.442695
        %v758 = vpow.pop %v757
        %v759 = vmul.f32 %v680, 1.442695
        %v760 = vpow.pop %v759
        %v761 = vmul.f32 %v681, 1.442695
        %v762 = vpow.pop %v761
        %v763 = vmul.f32 %v682, 1.442695
        %v764 = vpow.pop %v763
        %v765 = vmul.f32 %v683, 1.442695
        %v766 = vpow.pop %v765
        %v767 = vmul.f32 %v684, 1.442695
        %v768 = vpow.pop %v767
        %v769 = vmul.f32 %v685, 1.442695
        %v770 = vpow.pop %v769
        %v771 = vmul.f32 %v686, 1.442695
        %v772 = vpow.pop %v771
        %v773 = vmul.f32 %v687, 1.442695
        %v774 = vpow.pop %v773
        %v775 = vmul.f32 %v688, 1.442695
        %v776 = vpow.pop %v775
        %v777 = vmul.f32 %v689, 1.442695
        %v778 = vpow.pop %v777
        %v779 = vmul.f32 %v690, 1.442695
        %v780 = vpow.pop %v779
        %v781 = vmul.f32 %v691, 1.442695
        %v782 = vpow.pop %v781
        %v783 = vmul.f32 %v692, 1.442695
        %v784 = vpow.pop %v783
        %v785 = vmul.f32 %v693, 1.442695
        %v786 = vpow.pop %v785
        %v787 = vmul.f32 %v694, 1.442695
        %v788 = vpow.pop %v787
        %v789 = vmul.f32 %v695, 1.442695
        %v790 = vpow.pop %v789
        %v791 = vmul.f32 %v696, 1.442695
        %v792 = vpow.pop %v791
        %v793 = vmul.f32 %v697, 1.442695
        %v794 = vpow.pop %v793
        %v795 = vmul.f32 %v698, 1.442695
        %v796 = vpow.pop %v795
        %v797 = vmul.f32 %v699, 1.442695
        %v798 = vpow.pop %v797
        %v799 = vmul.f32 %v700, 1.442695
        %v800 = vpow.pop %v799
        %v801 = vmul.f32 %v701, 1.442695
        %v802 = vpow.pop %v801
        %v803 = vmul.f32 %v702, 1.442695
        %v804 = vpow.pop %v803
        %v805 = vmul.f32 %v703, 1.442695
        %v806 = vpow.pop %v805
        %v807 = vmul.f32 %v704, 1.442695
        %v808 = vpow.pop %v807
        %v809 = vmul.f32 %v705, 1.442695
        %v810 = vpow.pop %v809
        %v811 = vmul.f32 %v706, 1.442695
        %v812 = vpow.pop %v811
        %v813 = vmul.f32 %v707, 1.442695
        %v814 = vpow.pop %v813
        %v815 = vmul.f32 %v708, 1.442695
        %v816 = vpow.pop %v815
        %v817 = vmul.f32 %v709, 1.442695
        %v818 = vpow.pop %v817
        %v819 = vmul.f32 %v710, 1.442695
        %v820 = vpow.pop %v819
        %v821 = vmul.f32 %v711, 1.442695
        %v822 = vpow.pop %v821
        %v823 = vmul.f32 %v712, 1.442695
        %v824 = vpow.pop %v823
        %v825 = vmul.f32 %v713, 1.442695
        %v826 = vpow.pop %v825
        %v827 = vmul.f32 %v714, 1.442695
        %v828 = vpow.pop %v827
        %v829 = vmul.f32 %v715, 1.442695
        %v830 = vpow.pop %v829
        %v831 = vmul.f32 %v716, 1.442695
        %v832 = vpow.pop %v831
        %v833 = vmul.f32 %v717, 1.442695
        %v834 = vpow.pop %v833
        %v835 = vmul.f32 %v718, 1.442695
        %v836 = vpow.pop %v835
        %v837 = vmul.f32 %v719, 1.442695
        %v838 = vpow.pop %v837
        %v839 = vmul.f32 %v720, 1.442695
        %v840 = vpow.pop %v839
        %v841 = vmul.f32 %v721, 1.442695
        %v842 = vpow.pop %v841
        %v843 = vmul.f32 %v722, 1.442695
        %v844 = vpow.pop %v843
        %v845 = vmul.f32 %v723, 1.442695
        %v846 = vpow.pop %v845
        %v847 = vmul.f32 %v724, 1.442695
        %v848 = vpow.pop %v847
        %v849 = vmul.f32 %v725, 1.442695
        %v850 = vpow.pop %v849
        %v851 = vmul.f32 %v726, 1.442695
        %v852 = vpow.pop %v851
        %v853 = vmul.f32 %v727, 1.442695
        %v854 = vpow.pop %v853
        %v855 = vmul.f32 %v728, 1.442695
        %v856 = vpow.pop %v855
        %v857 = vadd.f32 %v730, 1.0
        %v858 = vlog2.pop %v857
        %v859 = vmul.f32 %v858, 0.6931472
        %v860 = vmul.f32 -0.5, %v730
        %v861 = vadd.f32 %v860, 1.0
        %v862 = vmul.f32 %v861, %v730
        %v863 = vand.u32 2147483647, %v730
        %vm864 = vcmp.lt.f32.partialorder %v863, 0.0004427343
        %v865 = vsel %vm864, %v862, %v859
        %v866 = vadd.f32 %v732, 1.0
        %v867 = vlog2.pop %v866
        %v868 = vmul.f32 %v867, 0.6931472
        %v869 = vmul.f32 -0.5, %v732
        %v870 = vadd.f32 %v869, 1.0
        %v871 = vmul.f32 %v870, %v732
        %v872 = vand.u32 2147483647, %v732
        %vm873 = vcmp.lt.f32.partialorder %v872, 0.0004427343
        %v874 = vsel %vm873, %v871, %v868
        %v875 = vadd.f32 %v734, 1.0
        %v876 = vlog2.pop %v875
        %v877 = vmul.f32 %v876, 0.6931472
        %v878 = vmul.f32 -0.5, %v734
        %v879 = vadd.f32 %v878, 1.0
        %v880 = vmul.f32 %v879, %v734
        %v881 = vand.u32 2147483647, %v734
        %vm882 = vcmp.lt.f32.partialorder %v881, 0.0004427343
        %v883 = vsel %vm882, %v880, %v877
        %v884 = vadd.f32 %v736, 1.0
        %v885 = vlog2.pop %v884
        %v886 = vmul.f32 %v885, 0.6931472
        %v887 = vmul.f32 -0.5, %v736
        %v888 = vadd.f32 %v887, 1.0
        %v889 = vmul.f32 %v888, %v736
        %v890 = vand.u32 2147483647, %v736
        %vm891 = vcmp.lt.f32.partialorder %v890, 0.0004427343
        %v892 = vsel %vm891, %v889, %v886
        %v893 = vadd.f32 %v738, 1.0
        %v894 = vlog2.pop %v893
        %v895 = vmul.f32 %v894, 0.6931472
        %v896 = vmul.f32 -0.5, %v738
        %v897 = vadd.f32 %v896, 1.0
        %v898 = vmul.f32 %v897, %v738
        %v899 = vand.u32 2147483647, %v738
        %vm900 = vcmp.lt.f32.partialorder %v899, 0.0004427343
        %v901 = vsel %vm900, %v898, %v895
        %v902 = vadd.f32 %v740, 1.0
        %v903 = vlog2.pop %v902
        %v904 = vmul.f32 %v903, 0.6931472
        %v905 = vmul.f32 -0.5, %v740
        %v906 = vadd.f32 %v905, 1.0
        %v907 = vmul.f32 %v906, %v740
        %v908 = vand.u32 2147483647, %v740
        %vm909 = vcmp.lt.f32.partialorder %v908, 0.0004427343
        %v910 = vsel %vm909, %v907, %v904
        %v911 = vadd.f32 %v742, 1.0
        %v912 = vlog2.pop %v911
        %v913 = vmul.f32 %v912, 0.6931472
        %v914 = vmul.f32 -0.5, %v742
        %v915 = vadd.f32 %v914, 1.0
        %v916 = vmul.f32 %v915, %v742
        %v917 = vand.u32 2147483647, %v742
        %vm918 = vcmp.lt.f32.partialorder %v917, 0.0004427343
        %v919 = vsel %vm918, %v916, %v913
        %v920 = vadd.f32 %v744, 1.0
        %v921 = vlog2.pop %v920
        %v922 = vmul.f32 %v921, 0.6931472
        %v923 = vmul.f32 -0.5, %v744
        %v924 = vadd.f32 %v923, 1.0
        %v925 = vmul.f32 %v924, %v744
        %v926 = vand.u32 2147483647, %v744
        %vm927 = vcmp.lt.f32.partialorder %v926, 0.0004427343
        %v928 = vsel %vm927, %v925, %v922
        %v929 = vadd.f32 %v746, 1.0
        %v930 = vlog2.pop %v929
        %v931 = vmul.f32 %v930, 0.6931472
        %v932 = vmul.f32 -0.5, %v746
        %v933 = vadd.f32 %v932, 1.0
        %v934 = vmul.f32 %v933, %v746
        %v935 = vand.u32 2147483647, %v746
        %vm936 = vcmp.lt.f32.partialorder %v935, 0.0004427343
        %v937 = vsel %vm936, %v934, %v931
        %v938 = vadd.f32 %v748, 1.0
        %v939 = vlog2.pop %v938
        %v940 = vmul.f32 %v939, 0.6931472
        %v941 = vmul.f32 -0.5, %v748
        %v942 = vadd.f32 %v941, 1.0
        %v943 = vmul.f32 %v942, %v748
        %v944 = vand.u32 2147483647, %v748
        %vm945 = vcmp.lt.f32.partialorder %v944, 0.0004427343
        %v946 = vsel %vm945, %v943, %v940
        %v947 = vadd.f32 %v750, 1.0
        %v948 = vlog2.pop %v947
        %v949 = vmul.f32 %v948, 0.6931472
        %v950 = vmul.f32 -0.5, %v750
        %v951 = vadd.f32 %v950, 1.0
        %v952 = vmul.f32 %v951, %v750
        %v953 = vand.u32 2147483647, %v750
        %vm954 = vcmp.lt.f32.partialorder %v953, 0.0004427343
        %v955 = vsel %vm954, %v952, %v949
        %v956 = vadd.f32 %v752, 1.0
        %v957 = vlog2.pop %v956
        %v958 = vmul.f32 %v957, 0.6931472
        %v959 = vmul.f32 -0.5, %v752
        %v960 = vadd.f32 %v959, 1.0
        %v961 = vmul.f32 %v960, %v752
        %v962 = vand.u32 2147483647, %v752
        %vm963 = vcmp.lt.f32.partialorder %v962, 0.0004427343
        %v964 = vsel %vm963, %v961, %v958
        %v965 = vadd.f32 %v754, 1.0
        %v966 = vlog2.pop %v965
        %v967 = vmul.f32 %v966, 0.6931472
        %v968 = vmul.f32 -0.5, %v754
        %v969 = vadd.f32 %v968, 1.0
        %v970 = vmul.f32 %v969, %v754
        %v971 = vand.u32 2147483647, %v754
        %vm972 = vcmp.lt.f32.partialorder %v971, 0.0004427343
        %v973 = vsel %vm972, %v970, %v967
        %v974 = vadd.f32 %v756, 1.0
        %v975 = vlog2.pop %v974
        %v976 = vmul.f32 %v975, 0.6931472
        %v977 = vmul.f32 -0.5, %v756
        %v978 = vadd.f32 %v977, 1.0
        %v979 = vmul.f32 %v978, %v756
        %v980 = vand.u32 2147483647, %v756
        %vm981 = vcmp.lt.f32.partialorder %v980, 0.0004427343
        %v982 = vsel %vm981, %v979, %v976
        %v983 = vadd.f32 %v758, 1.0
        %v984 = vlog2.pop %v983
        %v985 = vmul.f32 %v984, 0.6931472
        %v986 = vmul.f32 -0.5, %v758
        %v987 = vadd.f32 %v986, 1.0
        %v988 = vmul.f32 %v987, %v758
        %v989 = vand.u32 2147483647, %v758
        %vm990 = vcmp.lt.f32.partialorder %v989, 0.0004427343
        %v991 = vsel %vm990, %v988, %v985
        %v992 = vadd.f32 %v760, 1.0
        %v993 = vlog2.pop %v992
        %v994 = vmul.f32 %v993, 0.6931472
        %v995 = vmul.f32 -0.5, %v760
        %v996 = vadd.f32 %v995, 1.0
        %v997 = vmul.f32 %v996, %v760
        %v998 = vand.u32 2147483647, %v760
        %vm999 = vcmp.lt.f32.partialorder %v998, 0.0004427343
        %v1000 = vsel %vm999, %v997, %v994
        %v1001 = vadd.f32 %v762, 1.0
        %v1002 = vlog2.pop %v1001
        %v1003 = vmul.f32 %v1002, 0.6931472
        %v1004 = vmul.f32 -0.5, %v762
        %v1005 = vadd.f32 %v1004, 1.0
        %v1006 = vmul.f32 %v1005, %v762
        %v1007 = vand.u32 2147483647, %v762
        %vm1008 = vcmp.lt.f32.partialorder %v1007, 0.0004427343
        %v1009 = vsel %vm1008, %v1006, %v1003
        %v1010 = vadd.f32 %v764, 1.0
        %v1011 = vlog2.pop %v1010
        %v1012 = vmul.f32 %v1011, 0.6931472
        %v1013 = vmul.f32 -0.5, %v764
        %v1014 = vadd.f32 %v1013, 1.0
        %v1015 = vmul.f32 %v1014, %v764
        %v1016 = vand.u32 2147483647, %v764
        %vm1017 = vcmp.lt.f32.partialorder %v1016, 0.0004427343
        %v1018 = vsel %vm1017, %v1015, %v1012
        %v1019 = vadd.f32 %v766, 1.0
        %v1020 = vlog2.pop %v1019
        %v1021 = vmul.f32 %v1020, 0.6931472
        %v1022 = vmul.f32 -0.5, %v766
        %v1023 = vadd.f32 %v1022, 1.0
        %v1024 = vmul.f32 %v1023, %v766
        %v1025 = vand.u32 2147483647, %v766
        %vm1026 = vcmp.lt.f32.partialorder %v1025, 0.0004427343
        %v1027 = vsel %vm1026, %v1024, %v1021
        %v1028 = vadd.f32 %v768, 1.0
        %v1029 = vlog2.pop %v1028
        %v1030 = vmul.f32 %v1029, 0.6931472
        %v1031 = vmul.f32 -0.5, %v768
        %v1032 = vadd.f32 %v1031, 1.0
        %v1033 = vmul.f32 %v1032, %v768
        %v1034 = vand.u32 2147483647, %v768
        %vm1035 = vcmp.lt.f32.partialorder %v1034, 0.0004427343
        %v1036 = vsel %vm1035, %v1033, %v1030
        %v1037 = vadd.f32 %v770, 1.0
        %v1038 = vlog2.pop %v1037
        %v1039 = vmul.f32 %v1038, 0.6931472
        %v1040 = vmul.f32 -0.5, %v770
        %v1041 = vadd.f32 %v1040, 1.0
        %v1042 = vmul.f32 %v1041, %v770
        %v1043 = vand.u32 2147483647, %v770
        %vm1044 = vcmp.lt.f32.partialorder %v1043, 0.0004427343
        %v1045 = vsel %vm1044, %v1042, %v1039
        %v1046 = vadd.f32 %v772, 1.0
        %v1047 = vlog2.pop %v1046
        %v1048 = vmul.f32 %v1047, 0.6931472
        %v1049 = vmul.f32 -0.5, %v772
        %v1050 = vadd.f32 %v1049, 1.0
        %v1051 = vmul.f32 %v1050, %v772
        %v1052 = vand.u32 2147483647, %v772
        %vm1053 = vcmp.lt.f32.partialorder %v1052, 0.0004427343
        %v1054 = vsel %vm1053, %v1051, %v1048
        %v1055 = vadd.f32 %v774, 1.0
        %v1056 = vlog2.pop %v1055
        %v1057 = vmul.f32 %v1056, 0.6931472
        %v1058 = vmul.f32 -0.5, %v774
        %v1059 = vadd.f32 %v1058, 1.0
        %v1060 = vmul.f32 %v1059, %v774
        %v1061 = vand.u32 2147483647, %v774
        %vm1062 = vcmp.lt.f32.partialorder %v1061, 0.0004427343
        %v1063 = vsel %vm1062, %v1060, %v1057
        %v1064 = vadd.f32 %v776, 1.0
        %v1065 = vlog2.pop %v1064
        %v1066 = vmul.f32 %v1065, 0.6931472
        %v1067 = vmul.f32 -0.5, %v776
        %v1068 = vadd.f32 %v1067, 1.0
        %v1069 = vmul.f32 %v1068, %v776
        %v1070 = vand.u32 2147483647, %v776
        %vm1071 = vcmp.lt.f32.partialorder %v1070, 0.0004427343
        %v1072 = vsel %vm1071, %v1069, %v1066
        %v1073 = vadd.f32 %v778, 1.0
        %v1074 = vlog2.pop %v1073
        %v1075 = vmul.f32 %v1074, 0.6931472
        %v1076 = vmul.f32 -0.5, %v778
        %v1077 = vadd.f32 %v1076, 1.0
        %v1078 = vmul.f32 %v1077, %v778
        %v1079 = vand.u32 2147483647, %v778
        %vm1080 = vcmp.lt.f32.partialorder %v1079, 0.0004427343
        %v1081 = vsel %vm1080, %v1078, %v1075
        %v1082 = vadd.f32 %v780, 1.0
        %v1083 = vlog2.pop %v1082
        %v1084 = vmul.f32 %v1083, 0.6931472
        %v1085 = vmul.f32 -0.5, %v780
        %v1086 = vadd.f32 %v1085, 1.0
        %v1087 = vmul.f32 %v1086, %v780
        %v1088 = vand.u32 2147483647, %v780
        %vm1089 = vcmp.lt.f32.partialorder %v1088, 0.0004427343
        %v1090 = vsel %vm1089, %v1087, %v1084
        %v1091 = vadd.f32 %v782, 1.0
        %v1092 = vlog2.pop %v1091
        %v1093 = vmul.f32 %v1092, 0.6931472
        %v1094 = vmul.f32 -0.5, %v782
        %v1095 = vadd.f32 %v1094, 1.0
        %v1096 = vmul.f32 %v1095, %v782
        %v1097 = vand.u32 2147483647, %v782
        %vm1098 = vcmp.lt.f32.partialorder %v1097, 0.0004427343
        %v1099 = vsel %vm1098, %v1096, %v1093
        %v1100 = vadd.f32 %v784, 1.0
        %v1101 = vlog2.pop %v1100
        %v1102 = vmul.f32 %v1101, 0.6931472
        %v1103 = vmul.f32 -0.5, %v784
        %v1104 = vadd.f32 %v1103, 1.0
        %v1105 = vmul.f32 %v1104, %v784
        %v1106 = vand.u32 2147483647, %v784
        %vm1107 = vcmp.lt.f32.partialorder %v1106, 0.0004427343
        %v1108 = vsel %vm1107, %v1105, %v1102
        %v1109 = vadd.f32 %v786, 1.0
        %v1110 = vlog2.pop %v1109
        %v1111 = vmul.f32 %v1110, 0.6931472
        %v1112 = vmul.f32 -0.5, %v786
        %v1113 = vadd.f32 %v1112, 1.0
        %v1114 = vmul.f32 %v1113, %v786
        %v1115 = vand.u32 2147483647, %v786
        %vm1116 = vcmp.lt.f32.partialorder %v1115, 0.0004427343
        %v1117 = vsel %vm1116, %v1114, %v1111
        %v1118 = vadd.f32 %v788, 1.0
        %v1119 = vlog2.pop %v1118
        %v1120 = vmul.f32 %v1119, 0.6931472
        %v1121 = vmul.f32 -0.5, %v788
        %v1122 = vadd.f32 %v1121, 1.0
        %v1123 = vmul.f32 %v1122, %v788
        %v1124 = vand.u32 2147483647, %v788
        %vm1125 = vcmp.lt.f32.partialorder %v1124, 0.0004427343
        %v1126 = vsel %vm1125, %v1123, %v1120
        %v1127 = vadd.f32 %v790, 1.0
        %v1128 = vlog2.pop %v1127
        %v1129 = vmul.f32 %v1128, 0.6931472
        %v1130 = vmul.f32 -0.5, %v790
        %v1131 = vadd.f32 %v1130, 1.0
        %v1132 = vmul.f32 %v1131, %v790
        %v1133 = vand.u32 2147483647, %v790
        %vm1134 = vcmp.lt.f32.partialorder %v1133, 0.0004427343
        %v1135 = vsel %vm1134, %v1132, %v1129
        %v1136 = vadd.f32 %v792, 1.0
        %v1137 = vlog2.pop %v1136
        %v1138 = vmul.f32 %v1137, 0.6931472
        %v1139 = vmul.f32 -0.5, %v792
        %v1140 = vadd.f32 %v1139, 1.0
        %v1141 = vmul.f32 %v1140, %v792
        %v1142 = vand.u32 2147483647, %v792
        %vm1143 = vcmp.lt.f32.partialorder %v1142, 0.0004427343
        %v1144 = vsel %vm1143, %v1141, %v1138
        %v1145 = vadd.f32 %v794, 1.0
        %v1146 = vlog2.pop %v1145
        %v1147 = vmul.f32 %v1146, 0.6931472
        %v1148 = vmul.f32 -0.5, %v794
        %v1149 = vadd.f32 %v1148, 1.0
        %v1150 = vmul.f32 %v1149, %v794
        %v1151 = vand.u32 2147483647, %v794
        %vm1152 = vcmp.lt.f32.partialorder %v1151, 0.0004427343
        %v1153 = vsel %vm1152, %v1150, %v1147
        %v1154 = vadd.f32 %v796, 1.0
        %v1155 = vlog2.pop %v1154
        %v1156 = vmul.f32 %v1155, 0.6931472
        %v1157 = vmul.f32 -0.5, %v796
        %v1158 = vadd.f32 %v1157, 1.0
        %v1159 = vmul.f32 %v1158, %v796
        %v1160 = vand.u32 2147483647, %v796
        %vm1161 = vcmp.lt.f32.partialorder %v1160, 0.0004427343
        %v1162 = vsel %vm1161, %v1159, %v1156
        %v1163 = vadd.f32 %v798, 1.0
        %v1164 = vlog2.pop %v1163
        %v1165 = vmul.f32 %v1164, 0.6931472
        %v1166 = vmul.f32 -0.5, %v798
        %v1167 = vadd.f32 %v1166, 1.0
        %v1168 = vmul.f32 %v1167, %v798
        %v1169 = vand.u32 2147483647, %v798
        %vm1170 = vcmp.lt.f32.partialorder %v1169, 0.0004427343
        %v1171 = vsel %vm1170, %v1168, %v1165
        %v1172 = vadd.f32 %v800, 1.0
        %v1173 = vlog2.pop %v1172
        %v1174 = vmul.f32 %v1173, 0.6931472
        %v1175 = vmul.f32 -0.5, %v800
        %v1176 = vadd.f32 %v1175, 1.0
        %v1177 = vmul.f32 %v1176, %v800
        %v1178 = vand.u32 2147483647, %v800
        %vm1179 = vcmp.lt.f32.partialorder %v1178, 0.0004427343
        %v1180 = vsel %vm1179, %v1177, %v1174
        %v1181 = vadd.f32 %v802, 1.0
        %v1182 = vlog2.pop %v1181
        %v1183 = vmul.f32 %v1182, 0.6931472
        %v1184 = vmul.f32 -0.5, %v802
        %v1185 = vadd.f32 %v1184, 1.0
        %v1186 = vmul.f32 %v1185, %v802
        %v1187 = vand.u32 2147483647, %v802
        %vm1188 = vcmp.lt.f32.partialorder %v1187, 0.0004427343
        %v1189 = vsel %vm1188, %v1186, %v1183
        %v1190 = vadd.f32 %v804, 1.0
        %v1191 = vlog2.pop %v1190
        %v1192 = vmul.f32 %v1191, 0.6931472
        %v1193 = vmul.f32 -0.5, %v804
        %v1194 = vadd.f32 %v1193, 1.0
        %v1195 = vmul.f32 %v1194, %v804
        %v1196 = vand.u32 2147483647, %v804
        %vm1197 = vcmp.lt.f32.partialorder %v1196, 0.0004427343
        %v1198 = vsel %vm1197, %v1195, %v1192
        %v1199 = vadd.f32 %v806, 1.0
        %v1200 = vlog2.pop %v1199
        %v1201 = vmul.f32 %v1200, 0.6931472
        %v1202 = vmul.f32 -0.5, %v806
        %v1203 = vadd.f32 %v1202, 1.0
        %v1204 = vmul.f32 %v1203, %v806
        %v1205 = vand.u32 2147483647, %v806
        %vm1206 = vcmp.lt.f32.partialorder %v1205, 0.0004427343
        %v1207 = vsel %vm1206, %v1204, %v1201
        %v1208 = vadd.f32 %v808, 1.0
        %v1209 = vlog2.pop %v1208
        %v1210 = vmul.f32 %v1209, 0.6931472
        %v1211 = vmul.f32 -0.5, %v808
        %v1212 = vadd.f32 %v1211, 1.0
        %v1213 = vmul.f32 %v1212, %v808
        %v1214 = vand.u32 2147483647, %v808
        %vm1215 = vcmp.lt.f32.partialorder %v1214, 0.0004427343
        %v1216 = vsel %vm1215, %v1213, %v1210
        %v1217 = vadd.f32 %v810, 1.0
        %v1218 = vlog2.pop %v1217
        %v1219 = vmul.f32 %v1218, 0.6931472
        %v1220 = vmul.f32 -0.5, %v810
        %v1221 = vadd.f32 %v1220, 1.0
        %v1222 = vmul.f32 %v1221, %v810
        %v1223 = vand.u32 2147483647, %v810
        %vm1224 = vcmp.lt.f32.partialorder %v1223, 0.0004427343
        %v1225 = vsel %vm1224, %v1222, %v1219
        %v1226 = vadd.f32 %v812, 1.0
        %v1227 = vlog2.pop %v1226
        %v1228 = vmul.f32 %v1227, 0.6931472
        %v1229 = vmul.f32 -0.5, %v812
        %v1230 = vadd.f32 %v1229, 1.0
        %v1231 = vmul.f32 %v1230, %v812
        %v1232 = vand.u32 2147483647, %v812
        %vm1233 = vcmp.lt.f32.partialorder %v1232, 0.0004427343
        %v1234 = vsel %vm1233, %v1231, %v1228
        %v1235 = vadd.f32 %v814, 1.0
        %v1236 = vlog2.pop %v1235
        %v1237 = vmul.f32 %v1236, 0.6931472
        %v1238 = vmul.f32 -0.5, %v814
        %v1239 = vadd.f32 %v1238, 1.0
        %v1240 = vmul.f32 %v1239, %v814
        %v1241 = vand.u32 2147483647, %v814
        %vm1242 = vcmp.lt.f32.partialorder %v1241, 0.0004427343
        %v1243 = vsel %vm1242, %v1240, %v1237
        %v1244 = vadd.f32 %v816, 1.0
        %v1245 = vlog2.pop %v1244
        %v1246 = vmul.f32 %v1245, 0.6931472
        %v1247 = vmul.f32 -0.5, %v816
        %v1248 = vadd.f32 %v1247, 1.0
        %v1249 = vmul.f32 %v1248, %v816
        %v1250 = vand.u32 2147483647, %v816
        %vm1251 = vcmp.lt.f32.partialorder %v1250, 0.0004427343
        %v1252 = vsel %vm1251, %v1249, %v1246
        %v1253 = vadd.f32 %v818, 1.0
        %v1254 = vlog2.pop %v1253
        %v1255 = vmul.f32 %v1254, 0.6931472
        %v1256 = vmul.f32 -0.5, %v818
        %v1257 = vadd.f32 %v1256, 1.0
        %v1258 = vmul.f32 %v1257, %v818
        %v1259 = vand.u32 2147483647, %v818
        %vm1260 = vcmp.lt.f32.partialorder %v1259, 0.0004427343
        %v1261 = vsel %vm1260, %v1258, %v1255
        %v1262 = vadd.f32 %v820, 1.0
        %v1263 = vlog2.pop %v1262
        %v1264 = vmul.f32 %v1263, 0.6931472
        %v1265 = vmul.f32 -0.5, %v820
        %v1266 = vadd.f32 %v1265, 1.0
        %v1267 = vmul.f32 %v1266, %v820
        %v1268 = vand.u32 2147483647, %v820
        %vm1269 = vcmp.lt.f32.partialorder %v1268, 0.0004427343
        %v1270 = vsel %vm1269, %v1267, %v1264
        %v1271 = vadd.f32 %v822, 1.0
        %v1272 = vlog2.pop %v1271
        %v1273 = vmul.f32 %v1272, 0.6931472
        %v1274 = vmul.f32 -0.5, %v822
        %v1275 = vadd.f32 %v1274, 1.0
        %v1276 = vmul.f32 %v1275, %v822
        %v1277 = vand.u32 2147483647, %v822
        %vm1278 = vcmp.lt.f32.partialorder %v1277, 0.0004427343
        %v1279 = vsel %vm1278, %v1276, %v1273
        %v1280 = vadd.f32 %v824, 1.0
        %v1281 = vlog2.pop %v1280
        %v1282 = vmul.f32 %v1281, 0.6931472
        %v1283 = vmul.f32 -0.5, %v824
        %v1284 = vadd.f32 %v1283, 1.0
        %v1285 = vmul.f32 %v1284, %v824
        %v1286 = vand.u32 2147483647, %v824
        %vm1287 = vcmp.lt.f32.partialorder %v1286, 0.0004427343
        %v1288 = vsel %vm1287, %v1285, %v1282
        %v1289 = vadd.f32 %v826, 1.0
        %v1290 = vlog2.pop %v1289
        %v1291 = vmul.f32 %v1290, 0.6931472
        %v1292 = vmul.f32 -0.5, %v826
        %v1293 = vadd.f32 %v1292, 1.0
        %v1294 = vmul.f32 %v1293, %v826
        %v1295 = vand.u32 2147483647, %v826
        %vm1296 = vcmp.lt.f32.partialorder %v1295, 0.0004427343
        %v1297 = vsel %vm1296, %v1294, %v1291
        %v1298 = vadd.f32 %v828, 1.0
        %v1299 = vlog2.pop %v1298
        %v1300 = vmul.f32 %v1299, 0.6931472
        %v1301 = vmul.f32 -0.5, %v828
        %v1302 = vadd.f32 %v1301, 1.0
        %v1303 = vmul.f32 %v1302, %v828
        %v1304 = vand.u32 2147483647, %v828
        %vm1305 = vcmp.lt.f32.partialorder %v1304, 0.0004427343
        %v1306 = vsel %vm1305, %v1303, %v1300
        %v1307 = vadd.f32 %v830, 1.0
        %v1308 = vlog2.pop %v1307
        %v1309 = vmul.f32 %v1308, 0.6931472
        %v1310 = vmul.f32 -0.5, %v830
        %v1311 = vadd.f32 %v1310, 1.0
        %v1312 = vmul.f32 %v1311, %v830
        %v1313 = vand.u32 2147483647, %v830
        %vm1314 = vcmp.lt.f32.partialorder %v1313, 0.0004427343
        %v1315 = vsel %vm1314, %v1312, %v1309
        %v1316 = vadd.f32 %v832, 1.0
        %v1317 = vlog2.pop %v1316
        %v1318 = vmul.f32 %v1317, 0.6931472
        %v1319 = vmul.f32 -0.5, %v832
        %v1320 = vadd.f32 %v1319, 1.0
        %v1321 = vmul.f32 %v1320, %v832
        %v1322 = vand.u32 2147483647, %v832
        %vm1323 = vcmp.lt.f32.partialorder %v1322, 0.0004427343
        %v1324 = vsel %vm1323, %v1321, %v1318
        %v1325 = vadd.f32 %v834, 1.0
        %v1326 = vlog2.pop %v1325
        %v1327 = vmul.f32 %v1326, 0.6931472
        %v1328 = vmul.f32 -0.5, %v834
        %v1329 = vadd.f32 %v1328, 1.0
        %v1330 = vmul.f32 %v1329, %v834
        %v1331 = vand.u32 2147483647, %v834
        %vm1332 = vcmp.lt.f32.partialorder %v1331, 0.0004427343
        %v1333 = vsel %vm1332, %v1330, %v1327
        %v1334 = vadd.f32 %v836, 1.0
        %v1335 = vlog2.pop %v1334
        %v1336 = vmul.f32 %v1335, 0.6931472
        %v1337 = vmul.f32 -0.5, %v836
        %v1338 = vadd.f32 %v1337, 1.0
        %v1339 = vmul.f32 %v1338, %v836
        %v1340 = vand.u32 2147483647, %v836
        %vm1341 = vcmp.lt.f32.partialorder %v1340, 0.0004427343
        %v1342 = vsel %vm1341, %v1339, %v1336
        %v1343 = vadd.f32 %v838, 1.0
        %v1344 = vlog2.pop %v1343
        %v1345 = vmul.f32 %v1344, 0.6931472
        %v1346 = vmul.f32 -0.5, %v838
        %v1347 = vadd.f32 %v1346, 1.0
        %v1348 = vmul.f32 %v1347, %v838
        %v1349 = vand.u32 2147483647, %v838
        %vm1350 = vcmp.lt.f32.partialorder %v1349, 0.0004427343
        %v1351 = vsel %vm1350, %v1348, %v1345
        %v1352 = vadd.f32 %v840, 1.0
        %v1353 = vlog2.pop %v1352
        %v1354 = vmul.f32 %v1353, 0.6931472
        %v1355 = vmul.f32 -0.5, %v840
        %v1356 = vadd.f32 %v1355, 1.0
        %v1357 = vmul.f32 %v1356, %v840
        %v1358 = vand.u32 2147483647, %v840
        %vm1359 = vcmp.lt.f32.partialorder %v1358, 0.0004427343
        %v1360 = vsel %vm1359, %v1357, %v1354
        %v1361 = vadd.f32 %v842, 1.0
        %v1362 = vlog2.pop %v1361
        %v1363 = vmul.f32 %v1362, 0.6931472
        %v1364 = vmul.f32 -0.5, %v842
        %v1365 = vadd.f32 %v1364, 1.0
        %v1366 = vmul.f32 %v1365, %v842
        %v1367 = vand.u32 2147483647, %v842
        %vm1368 = vcmp.lt.f32.partialorder %v1367, 0.0004427343
        %v1369 = vsel %vm1368, %v1366, %v1363
        %v1370 = vadd.f32 %v844, 1.0
        %v1371 = vlog2.pop %v1370
        %v1372 = vmul.f32 %v1371, 0.6931472
        %v1373 = vmul.f32 -0.5, %v844
        %v1374 = vadd.f32 %v1373, 1.0
        %v1375 = vmul.f32 %v1374, %v844
        %v1376 = vand.u32 2147483647, %v844
        %vm1377 = vcmp.lt.f32.partialorder %v1376, 0.0004427343
        %v1378 = vsel %vm1377, %v1375, %v1372
        %v1379 = vadd.f32 %v846, 1.0
        %v1380 = vlog2.pop %v1379
        %v1381 = vmul.f32 %v1380, 0.6931472
        %v1382 = vmul.f32 -0.5, %v846
        %v1383 = vadd.f32 %v1382, 1.0
        %v1384 = vmul.f32 %v1383, %v846
        %v1385 = vand.u32 2147483647, %v846
        %vm1386 = vcmp.lt.f32.partialorder %v1385, 0.0004427343
        %v1387 = vsel %vm1386, %v1384, %v1381
        %v1388 = vadd.f32 %v848, 1.0
        %v1389 = vlog2.pop %v1388
        %v1390 = vmul.f32 %v1389, 0.6931472
        %v1391 = vmul.f32 -0.5, %v848
        %v1392 = vadd.f32 %v1391, 1.0
        %v1393 = vmul.f32 %v1392, %v848
        %v1394 = vand.u32 2147483647, %v848
        %vm1395 = vcmp.lt.f32.partialorder %v1394, 0.0004427343
        %v1396 = vsel %vm1395, %v1393, %v1390
        %v1397 = vadd.f32 %v850, 1.0
        %v1398 = vlog2.pop %v1397
        %v1399 = vmul.f32 %v1398, 0.6931472
        %v1400 = vmul.f32 -0.5, %v850
        %v1401 = vadd.f32 %v1400, 1.0
        %v1402 = vmul.f32 %v1401, %v850
        %v1403 = vand.u32 2147483647, %v850
        %vm1404 = vcmp.lt.f32.partialorder %v1403, 0.0004427343
        %v1405 = vsel %vm1404, %v1402, %v1399
        %v1406 = vadd.f32 %v852, 1.0
        %v1407 = vlog2.pop %v1406
        %v1408 = vmul.f32 %v1407, 0.6931472
        %v1409 = vmul.f32 -0.5, %v852
        %v1410 = vadd.f32 %v1409, 1.0
        %v1411 = vmul.f32 %v1410, %v852
        %v1412 = vand.u32 2147483647, %v852
        %vm1413 = vcmp.lt.f32.partialorder %v1412, 0.0004427343
        %v1414 = vsel %vm1413, %v1411, %v1408
        %v1415 = vadd.f32 %v854, 1.0
        %v1416 = vlog2.pop %v1415
        %v1417 = vmul.f32 %v1416, 0.6931472
        %v1418 = vmul.f32 -0.5, %v854
        %v1419 = vadd.f32 %v1418, 1.0
        %v1420 = vmul.f32 %v1419, %v854
        %v1421 = vand.u32 2147483647, %v854
        %vm1422 = vcmp.lt.f32.partialorder %v1421, 0.0004427343
        %v1423 = vsel %vm1422, %v1420, %v1417
        %v1424 = vadd.f32 %v856, 1.0
        %v1425 = vlog2.pop %v1424
        %v1426 = vmul.f32 %v1425, 0.6931472
        %v1427 = vmul.f32 -0.5, %v856
        %v1428 = vadd.f32 %v1427, 1.0
        %v1429 = vmul.f32 %v1428, %v856
        %v1430 = vand.u32 2147483647, %v856
        %vm1431 = vcmp.lt.f32.partialorder %v1430, 0.0004427343
        %v1432 = vsel %vm1431, %v1429, %v1426
        %v1433 = vadd.f32 %v409, %v865
        %v1434 = vadd.f32 %v410, %v874
        %v1435 = vadd.f32 %v411, %v883
        %v1436 = vadd.f32 %v412, %v892
        %v1437 = vadd.f32 %v413, %v901
        %v1438 = vadd.f32 %v414, %v910
        %v1439 = vadd.f32 %v415, %v919
        %v1440 = vadd.f32 %v416, %v928
        %v1441 = vadd.f32 %v417, %v937
        %v1442 = vadd.f32 %v418, %v946
        %v1443 = vadd.f32 %v419, %v955
        %v1444 = vadd.f32 %v420, %v964
        %v1445 = vadd.f32 %v421, %v973
        %v1446 = vadd.f32 %v422, %v982
        %v1447 = vadd.f32 %v423, %v991
        %v1448 = vadd.f32 %v424, %v1000
        %v1449 = vadd.f32 %v425, %v1009
        %v1450 = vadd.f32 %v426, %v1018
        %v1451 = vadd.f32 %v427, %v1027
        %v1452 = vadd.f32 %v428, %v1036
        %v1453 = vadd.f32 %v429, %v1045
        %v1454 = vadd.f32 %v430, %v1054
        %v1455 = vadd.f32 %v431, %v1063
        %v1456 = vadd.f32 %v432, %v1072
        %v1457 = vadd.f32 %v433, %v1081
        %v1458 = vadd.f32 %v434, %v1090
        %v1459 = vadd.f32 %v435, %v1099
        %v1460 = vadd.f32 %v436, %v1108
        %v1461 = vadd.f32 %v437, %v1117
        %v1462 = vadd.f32 %v438, %v1126
        %v1463 = vadd.f32 %v439, %v1135
        %v1464 = vadd.f32 %v440, %v1144
        %v1465 = vadd.f32 %v441, %v1153
        %v1466 = vadd.f32 %v442, %v1162
        %v1467 = vadd.f32 %v443, %v1171
        %v1468 = vadd.f32 %v444, %v1180
        %v1469 = vadd.f32 %v445, %v1189
        %v1470 = vadd.f32 %v446, %v1198
        %v1471 = vadd.f32 %v447, %v1207
        %v1472 = vadd.f32 %v448, %v1216
        %v1473 = vadd.f32 %v449, %v1225
        %v1474 = vadd.f32 %v450, %v1234
        %v1475 = vadd.f32 %v451, %v1243
        %v1476 = vadd.f32 %v452, %v1252
        %v1477 = vadd.f32 %v453, %v1261
        %v1478 = vadd.f32 %v454, %v1270
        %v1479 = vadd.f32 %v455, %v1279
        %v1480 = vadd.f32 %v456, %v1288
        %v1481 = vadd.f32 %v457, %v1297
        %v1482 = vadd.f32 %v458, %v1306
        %v1483 = vadd.f32 %v459, %v1315
        %v1484 = vadd.f32 %v460, %v1324
        %v1485 = vadd.f32 %v461, %v1333
        %v1486 = vadd.f32 %v462, %v1342
        %v1487 = vadd.f32 %v463, %v1351
        %v1488 = vadd.f32 %v464, %v1360
        %v1489 = vadd.f32 %v465, %v1369
        %v1490 = vadd.f32 %v466, %v1378
        %v1491 = vadd.f32 %v467, %v1387
        %v1492 = vadd.f32 %v468, %v1396
        %v1493 = vadd.f32 %v469, %v1405
        %v1494 = vadd.f32 %v470, %v1414
        %v1495 = vadd.f32 %v471, %v1423
        %v1496 = vadd.f32 %v472, %v1432
        %v1497 = vsel %vm473, %v537, %v1433
        %v1498 = vsel %vm474, %v538, %v1434
        %v1499 = vsel %vm475, %v539, %v1435
        %v1500 = vsel %vm476, %v540, %v1436
        %v1501 = vsel %vm477, %v541, %v1437
        %v1502 = vsel %vm478, %v542, %v1438
        %v1503 = vsel %vm479, %v543, %v1439
        %v1504 = vsel %vm480, %v544, %v1440
        %v1505 = vsel %vm481, %v545, %v1441
        %v1506 = vsel %vm482, %v546, %v1442
        %v1507 = vsel %vm483, %v547, %v1443
        %v1508 = vsel %vm484, %v548, %v1444
        %v1509 = vsel %vm485, %v549, %v1445
        %v1510 = vsel %vm486, %v550, %v1446
        %v1511 = vsel %vm487, %v551, %v1447
        %v1512 = vsel %vm488, %v552, %v1448
        %v1513 = vsel %vm489, %v553, %v1449
        %v1514 = vsel %vm490, %v554, %v1450
        %v1515 = vsel %vm491, %v555, %v1451
        %v1516 = vsel %vm492, %v556, %v1452
        %v1517 = vsel %vm493, %v557, %v1453
        %v1518 = vsel %vm494, %v558, %v1454
        %v1519 = vsel %vm495, %v559, %v1455
        %v1520 = vsel %vm496, %v560, %v1456
        %v1521 = vsel %vm497, %v561, %v1457
        %v1522 = vsel %vm498, %v562, %v1458
        %v1523 = vsel %vm499, %v563, %v1459
        %v1524 = vsel %vm500, %v564, %v1460
        %v1525 = vsel %vm501, %v565, %v1461
        %v1526 = vsel %vm502, %v566, %v1462
        %v1527 = vsel %vm503, %v567, %v1463
        %v1528 = vsel %vm504, %v568, %v1464
        %v1529 = vsel %vm505, %v569, %v1465
        %v1530 = vsel %vm506, %v570, %v1466
        %v1531 = vsel %vm507, %v571, %v1467
        %v1532 = vsel %vm508, %v572, %v1468
        %v1533 = vsel %vm509, %v573, %v1469
        %v1534 = vsel %vm510, %v574, %v1470
        %v1535 = vsel %vm511, %v575, %v1471
        %v1536 = vsel %vm512, %v576, %v1472
        %v1537 = vsel %vm513, %v577, %v1473
        %v1538 = vsel %vm514, %v578, %v1474
        %v1539 = vsel %vm515, %v579, %v1475
        %v1540 = vsel %vm516, %v580, %v1476
        %v1541 = vsel %vm517, %v581, %v1477
        %v1542 = vsel %vm518, %v582, %v1478
        %v1543 = vsel %vm519, %v583, %v1479
        %v1544 = vsel %vm520, %v584, %v1480
        %v1545 = vsel %vm521, %v585, %v1481
        %v1546 = vsel %vm522, %v586, %v1482
        %v1547 = vsel %vm523, %v587, %v1483
        %v1548 = vsel %vm524, %v588, %v1484
        %v1549 = vsel %vm525, %v589, %v1485
        %v1550 = vsel %vm526, %v590, %v1486
        %v1551 = vsel %vm527, %v591, %v1487
        %v1552 = vsel %vm528, %v592, %v1488
        %v1553 = vsel %vm529, %v593, %v1489
        %v1554 = vsel %vm530, %v594, %v1490
        %v1555 = vsel %vm531, %v595, %v1491
        %v1556 = vsel %vm532, %v596, %v1492
        %v1557 = vsel %vm533, %v597, %v1493
        %v1558 = vsel %vm534, %v598, %v1494
        %v1559 = vsel %vm535, %v599, %v1495
        %v1560 = vsel %vm536, %v600, %v1496
        %v1561 = vld [vmem:[%s295] sm:$0xff]
        %v1562 = vld [vmem:[%s295 + $0x8] sm:$0xff]
        %v1563 = vld [vmem:[%s295 + $0x10] sm:$0xff]
        %v1564 = vld [vmem:[%s295 + $0x18] sm:$0xff]
        %v1565 = vld [vmem:[%s295 + $0x20] sm:$0xff]
        %v1566 = vld [vmem:[%s295 + $0x28] sm:$0xff]
        %v1567 = vld [vmem:[%s295 + $0x30] sm:$0xff]
        %v1568 = vld [vmem:[%s295 + $0x38] sm:$0xff]
        %v1569 = vld [vmem:[%s295 + $0x40] sm:$0xff]
        %v1570 = vld [vmem:[%s295 + $0x48] sm:$0xff]
        %v1571 = vld [vmem:[%s295 + $0x50] sm:$0xff]
        %v1572 = vld [vmem:[%s295 + $0x58] sm:$0xff]
        %v1573 = vld [vmem:[%s295 + $0x60] sm:$0xff]
        %v1574 = vld [vmem:[%s295 + $0x68] sm:$0xff]
        %v1575 = vld [vmem:[%s295 + $0x70] sm:$0xff]
        %v1576 = vld [vmem:[%s295 + $0x78] sm:$0xff]
        %v1577 = vld [vmem:[%s295 + $0x80] sm:$0xff]
        %v1578 = vld [vmem:[%s295 + $0x88] sm:$0xff]
        %v1579 = vld [vmem:[%s295 + $0x90] sm:$0xff]
        %v1580 = vld [vmem:[%s295 + $0x98] sm:$0xff]
        %v1581 = vld [vmem:[%s295 + $0xa0] sm:$0xff]
        %v1582 = vld [vmem:[%s295 + $0xa8] sm:$0xff]
        %v1583 = vld [vmem:[%s295 + $0xb0] sm:$0xff]
        %v1584 = vld [vmem:[%s295 + $0xb8] sm:$0xff]
        %v1585 = vld [vmem:[%s295 + $0xc0] sm:$0xff]
        %v1586 = vld [vmem:[%s295 + $0xc8] sm:$0xff]
        %v1587 = vld [vmem:[%s295 + $0xd0] sm:$0xff]
        %v1588 = vld [vmem:[%s295 + $0xd8] sm:$0xff]
        %v1589 = vld [vmem:[%s295 + $0xe0] sm:$0xff]
        %v1590 = vld [vmem:[%s295 + $0xe8] sm:$0xff]
        %v1591 = vld [vmem:[%s295 + $0xf0] sm:$0xff]
        %v1592 = vld [vmem:[%s295 + $0xf8] sm:$0xff]
        %v1593 = vld [vmem:[%s295 + $0x100] sm:$0xff]
        %v1594 = vld [vmem:[%s295 + $0x108] sm:$0xff]
        %v1595 = vld [vmem:[%s295 + $0x110] sm:$0xff]
        %v1596 = vld [vmem:[%s295 + $0x118] sm:$0xff]
        %v1597 = vld [vmem:[%s295 + $0x120] sm:$0xff]
        %v1598 = vld [vmem:[%s295 + $0x128] sm:$0xff]
        %v1599 = vld [vmem:[%s295 + $0x130] sm:$0xff]
        %v1600 = vld [vmem:[%s295 + $0x138] sm:$0xff]
        %v1601 = vld [vmem:[%s295 + $0x140] sm:$0xff]
        %v1602 = vld [vmem:[%s295 + $0x148] sm:$0xff]
        %v1603 = vld [vmem:[%s295 + $0x150] sm:$0xff]
        %v1604 = vld [vmem:[%s295 + $0x158] sm:$0xff]
        %v1605 = vld [vmem:[%s295 + $0x160] sm:$0xff]
        %v1606 = vld [vmem:[%s295 + $0x168] sm:$0xff]
        %v1607 = vld [vmem:[%s295 + $0x170] sm:$0xff]
        %v1608 = vld [vmem:[%s295 + $0x178] sm:$0xff]
        %v1609 = vld [vmem:[%s295 + $0x180] sm:$0xff]
        %v1610 = vld [vmem:[%s295 + $0x188] sm:$0xff]
        %v1611 = vld [vmem:[%s295 + $0x190] sm:$0xff]
        %v1612 = vld [vmem:[%s295 + $0x198] sm:$0xff]
        %v1613 = vld [vmem:[%s295 + $0x1a0] sm:$0xff]
        %v1614 = vld [vmem:[%s295 + $0x1a8] sm:$0xff]
        %v1615 = vld [vmem:[%s295 + $0x1b0] sm:$0xff]
        %v1616 = vld [vmem:[%s295 + $0x1b8] sm:$0xff]
        %v1617 = vld [vmem:[%s295 + $0x1c0] sm:$0xff]
        %v1618 = vld [vmem:[%s295 + $0x1c8] sm:$0xff]
        %v1619 = vld [vmem:[%s295 + $0x1d0] sm:$0xff]
        %v1620 = vld [vmem:[%s295 + $0x1d8] sm:$0xff]
        %v1621 = vld [vmem:[%s295 + $0x1e0] sm:$0xff]
        %v1622 = vld [vmem:[%s295 + $0x1e8] sm:$0xff]
        %v1623 = vld [vmem:[%s295 + $0x1f0] sm:$0xff]
        %v1624 = vld [vmem:[%s295 + $0x1f8] sm:$0xff]
        %v1625 = vmul.f32 %v1497, %v1561
        %v1626 = vmul.f32 %v1498, %v1562
        %v1627 = vmul.f32 %v1499, %v1563
        %v1628 = vmul.f32 %v1500, %v1564
        %v1629 = vmul.f32 %v1501, %v1565
        %v1630 = vmul.f32 %v1502, %v1566
        %v1631 = vmul.f32 %v1503, %v1567
        %v1632 = vmul.f32 %v1504, %v1568
        %v1633 = vmul.f32 %v1505, %v1569
        %v1634 = vmul.f32 %v1506, %v1570
        %v1635 = vmul.f32 %v1507, %v1571
        %v1636 = vmul.f32 %v1508, %v1572
        %v1637 = vmul.f32 %v1509, %v1573
        %v1638 = vmul.f32 %v1510, %v1574
        %v1639 = vmul.f32 %v1511, %v1575
        %v1640 = vmul.f32 %v1512, %v1576
        %v1641 = vmul.f32 %v1513, %v1577
        %v1642 = vmul.f32 %v1514, %v1578
        %v1643 = vmul.f32 %v1515, %v1579
        %v1644 = vmul.f32 %v1516, %v1580
        %v1645 = vmul.f32 %v1517, %v1581
        %v1646 = vmul.f32 %v1518, %v1582
        %v1647 = vmul.f32 %v1519, %v1583
        %v1648 = vmul.f32 %v1520, %v1584
        %v1649 = vmul.f32 %v1521, %v1585
        %v1650 = vmul.f32 %v1522, %v1586
        %v1651 = vmul.f32 %v1523, %v1587
        %v1652 = vmul.f32 %v1524, %v1588
        %v1653 = vmul.f32 %v1525, %v1589
        %v1654 = vmul.f32 %v1526, %v1590
        %v1655 = vmul.f32 %v1527, %v1591
        %v1656 = vmul.f32 %v1528, %v1592
        %v1657 = vmul.f32 %v1529, %v1593
        %v1658 = vmul.f32 %v1530, %v1594
        %v1659 = vmul.f32 %v1531, %v1595
        %v1660 = vmul.f32 %v1532, %v1596
        %v1661 = vmul.f32 %v1533, %v1597
        %v1662 = vmul.f32 %v1534, %v1598
        %v1663 = vmul.f32 %v1535, %v1599
        %v1664 = vmul.f32 %v1536, %v1600
        %v1665 = vmul.f32 %v1537, %v1601
        %v1666 = vmul.f32 %v1538, %v1602
        %v1667 = vmul.f32 %v1539, %v1603
        %v1668 = vmul.f32 %v1540, %v1604
        %v1669 = vmul.f32 %v1541, %v1605
        %v1670 = vmul.f32 %v1542, %v1606
        %v1671 = vmul.f32 %v1543, %v1607
        %v1672 = vmul.f32 %v1544, %v1608
        %v1673 = vmul.f32 %v1545, %v1609
        %v1674 = vmul.f32 %v1546, %v1610
        %v1675 = vmul.f32 %v1547, %v1611
        %v1676 = vmul.f32 %v1548, %v1612
        %v1677 = vmul.f32 %v1549, %v1613
        %v1678 = vmul.f32 %v1550, %v1614
        %v1679 = vmul.f32 %v1551, %v1615
        %v1680 = vmul.f32 %v1552, %v1616
        %v1681 = vmul.f32 %v1553, %v1617
        %v1682 = vmul.f32 %v1554, %v1618
        %v1683 = vmul.f32 %v1555, %v1619
        %v1684 = vmul.f32 %v1556, %v1620
        %v1685 = vmul.f32 %v1557, %v1621
        %v1686 = vmul.f32 %v1558, %v1622
        %v1687 = vmul.f32 %v1559, %v1623
        %v1688 = vmul.f32 %v1560, %v1624
        %v1689 = vld [vmem:[%s277] sm:$0xff]
        %v1690 = vld [vmem:[%s277 + $0x8] sm:$0xff]
        %v1691 = vld [vmem:[%s277 + $0x10] sm:$0xff]
        %v1692 = vld [vmem:[%s277 + $0x18] sm:$0xff]
        %v1693 = vld [vmem:[%s277 + $0x20] sm:$0xff]
        %v1694 = vld [vmem:[%s277 + $0x28] sm:$0xff]
        %v1695 = vld [vmem:[%s277 + $0x30] sm:$0xff]
        %v1696 = vld [vmem:[%s277 + $0x38] sm:$0xff]
        %v1697 = vld [vmem:[%s277 + $0x40] sm:$0xff]
        %v1698 = vld [vmem:[%s277 + $0x48] sm:$0xff]
        %v1699 = vld [vmem:[%s277 + $0x50] sm:$0xff]
        %v1700 = vld [vmem:[%s277 + $0x58] sm:$0xff]
        %v1701 = vld [vmem:[%s277 + $0x60] sm:$0xff]
        %v1702 = vld [vmem:[%s277 + $0x68] sm:$0xff]
        %v1703 = vld [vmem:[%s277 + $0x70] sm:$0xff]
        %v1704 = vld [vmem:[%s277 + $0x78] sm:$0xff]
        %v1705 = vld [vmem:[%s277 + $0x80] sm:$0xff]
        %v1706 = vld [vmem:[%s277 + $0x88] sm:$0xff]
        %v1707 = vld [vmem:[%s277 + $0x90] sm:$0xff]
        %v1708 = vld [vmem:[%s277 + $0x98] sm:$0xff]
        %v1709 = vld [vmem:[%s277 + $0xa0] sm:$0xff]
        %v1710 = vld [vmem:[%s277 + $0xa8] sm:$0xff]
        %v1711 = vld [vmem:[%s277 + $0xb0] sm:$0xff]
        %v1712 = vld [vmem:[%s277 + $0xb8] sm:$0xff]
        %v1713 = vld [vmem:[%s277 + $0xc0] sm:$0xff]
        %v1714 = vld [vmem:[%s277 + $0xc8] sm:$0xff]
        %v1715 = vld [vmem:[%s277 + $0xd0] sm:$0xff]
        %v1716 = vld [vmem:[%s277 + $0xd8] sm:$0xff]
        %v1717 = vld [vmem:[%s277 + $0xe0] sm:$0xff]
        %v1718 = vld [vmem:[%s277 + $0xe8] sm:$0xff]
        %v1719 = vld [vmem:[%s277 + $0xf0] sm:$0xff]
        %v1720 = vld [vmem:[%s277 + $0xf8] sm:$0xff]
        %v1721 = vld [vmem:[%s277 + $0x100] sm:$0xff]
        %v1722 = vld [vmem:[%s277 + $0x108] sm:$0xff]
        %v1723 = vld [vmem:[%s277 + $0x110] sm:$0xff]
        %v1724 = vld [vmem:[%s277 + $0x118] sm:$0xff]
        %v1725 = vld [vmem:[%s277 + $0x120] sm:$0xff]
        %v1726 = vld [vmem:[%s277 + $0x128] sm:$0xff]
        %v1727 = vld [vmem:[%s277 + $0x130] sm:$0xff]
        %v1728 = vld [vmem:[%s277 + $0x138] sm:$0xff]
        %v1729 = vld [vmem:[%s277 + $0x140] sm:$0xff]
        %v1730 = vld [vmem:[%s277 + $0x148] sm:$0xff]
        %v1731 = vld [vmem:[%s277 + $0x150] sm:$0xff]
        %v1732 = vld [vmem:[%s277 + $0x158] sm:$0xff]
        %v1733 = vld [vmem:[%s277 + $0x160] sm:$0xff]
        %v1734 = vld [vmem:[%s277 + $0x168] sm:$0xff]
        %v1735 = vld [vmem:[%s277 + $0x170] sm:$0xff]
        %v1736 = vld [vmem:[%s277 + $0x178] sm:$0xff]
        %v1737 = vld [vmem:[%s277 + $0x180] sm:$0xff]
        %v1738 = vld [vmem:[%s277 + $0x188] sm:$0xff]
        %v1739 = vld [vmem:[%s277 + $0x190] sm:$0xff]
        %v1740 = vld [vmem:[%s277 + $0x198] sm:$0xff]
        %v1741 = vld [vmem:[%s277 + $0x1a0] sm:$0xff]
        %v1742 = vld [vmem:[%s277 + $0x1a8] sm:$0xff]
        %v1743 = vld [vmem:[%s277 + $0x1b0] sm:$0xff]
        %v1744 = vld [vmem:[%s277 + $0x1b8] sm:$0xff]
        %v1745 = vld [vmem:[%s277 + $0x1c0] sm:$0xff]
        %v1746 = vld [vmem:[%s277 + $0x1c8] sm:$0xff]
        %v1747 = vld [vmem:[%s277 + $0x1d0] sm:$0xff]
        %v1748 = vld [vmem:[%s277 + $0x1d8] sm:$0xff]
        %v1749 = vld [vmem:[%s277 + $0x1e0] sm:$0xff]
        %v1750 = vld [vmem:[%s277 + $0x1e8] sm:$0xff]
        %v1751 = vld [vmem:[%s277 + $0x1f0] sm:$0xff]
        %v1752 = vld [vmem:[%s277 + $0x1f8] sm:$0xff]
        %1753 = vxpose.xlu0.b32.start [1/16] %v1689, 128
        %1754 = vxpose.xlu0.b32.cont [2/16] %v1691, 128
        %1755 = vxpose.xlu0.b32.cont [3/16] %v1693, 128
        %1756 = vxpose.xlu0.b32.cont [4/16] %v1695, 128
        %1757 = vxpose.xlu0.b32.cont [5/16] %v1697, 128
        %1758 = vxpose.xlu0.b32.cont [6/16] %v1699, 128
        %1759 = vxpose.xlu0.b32.cont [7/16] %v1701, 128
        %1760 = vxpose.xlu0.b32.cont [8/16] %v1703, 128
        %1761 = vxpose.xlu0.b32.cont [9/16] %v1705, 128
        %1762 = vxpose.xlu0.b32.cont [10/16] %v1707, 128
        %1763 = vxpose.xlu0.b32.cont [11/16] %v1709, 128
        %1764 = vxpose.xlu0.b32.cont [12/16] %v1711, 128
        %1765 = vxpose.xlu0.b32.cont [13/16] %v1713, 128
        %1766 = vxpose.xlu0.b32.cont [14/16] %v1715, 128
        %1767 = vxpose.xlu0.b32.cont [15/16] %v1717, 128
        %1768 = vxpose.xlu0.b32.end [16/16] %v1719, 128
        %v1769 = vpop.trf.xlu0
        %v1770 = vpop.trf.xlu0
        %v1771 = vpop.trf.xlu0
        %v1772 = vpop.trf.xlu0
        %v1773 = vpop.trf.xlu0
        %v1774 = vpop.trf.xlu0
        %v1775 = vpop.trf.xlu0
        %v1776 = vpop.trf.xlu0
        %v1777 = vpop.trf.xlu0
        %v1778 = vpop.trf.xlu0
        %v1779 = vpop.trf.xlu0
        %v1780 = vpop.trf.xlu0
        %v1781 = vpop.trf.xlu0
        %v1782 = vpop.trf.xlu0
        %v1783 = vpop.trf.xlu0
        %v1784 = vpop.trf.xlu0
        %1785 = vxpose.xlu0.b32.start [1/16] %v1690, 128
        %1786 = vxpose.xlu0.b32.cont [2/16] %v1692, 128
        %1787 = vxpose.xlu0.b32.cont [3/16] %v1694, 128
        %1788 = vxpose.xlu0.b32.cont [4/16] %v1696, 128
        %1789 = vxpose.xlu0.b32.cont [5/16] %v1698, 128
        %1790 = vxpose.xlu0.b32.cont [6/16] %v1700, 128
        %1791 = vxpose.xlu0.b32.cont [7/16] %v1702, 128
        %1792 = vxpose.xlu0.b32.cont [8/16] %v1704, 128
        %1793 = vxpose.xlu0.b32.cont [9/16] %v1706, 128
        %1794 = vxpose.xlu0.b32.cont [10/16] %v1708, 128
        %1795 = vxpose.xlu0.b32.cont [11/16] %v1710, 128
        %1796 = vxpose.xlu0.b32.cont [12/16] %v1712, 128
        %1797 = vxpose.xlu0.b32.cont [13/16] %v1714, 128
        %1798 = vxpose.xlu0.b32.cont [14/16] %v1716, 128
        %1799 = vxpose.xlu0.b32.cont [15/16] %v1718, 128
        %1800 = vxpose.xlu0.b32.end [16/16] %v1720, 128
        %v1801 = vpop.trf.xlu0
        %v1802 = vpop.trf.xlu0
        %v1803 = vpop.trf.xlu0
        %v1804 = vpop.trf.xlu0
        %v1805 = vpop.trf.xlu0
        %v1806 = vpop.trf.xlu0
        %v1807 = vpop.trf.xlu0
        %v1808 = vpop.trf.xlu0
        %v1809 = vpop.trf.xlu0
        %v1810 = vpop.trf.xlu0
        %v1811 = vpop.trf.xlu0
        %v1812 = vpop.trf.xlu0
        %v1813 = vpop.trf.xlu0
        %v1814 = vpop.trf.xlu0
        %v1815 = vpop.trf.xlu0
        %v1816 = vpop.trf.xlu0
        %1817 = vxpose.xlu0.b32.start [1/16] %v1721, 128
        %1818 = vxpose.xlu0.b32.cont [2/16] %v1723, 128
        %1819 = vxpose.xlu0.b32.cont [3/16] %v1725, 128
        %1820 = vxpose.xlu0.b32.cont [4/16] %v1727, 128
        %1821 = vxpose.xlu0.b32.cont [5/16] %v1729, 128
        %1822 = vxpose.xlu0.b32.cont [6/16] %v1731, 128
        %1823 = vxpose.xlu0.b32.cont [7/16] %v1733, 128
        %1824 = vxpose.xlu0.b32.cont [8/16] %v1735, 128
        %1825 = vxpose.xlu0.b32.cont [9/16] %v1737, 128
        %1826 = vxpose.xlu0.b32.cont [10/16] %v1739, 128
        %1827 = vxpose.xlu0.b32.cont [11/16] %v1741, 128
        %1828 = vxpose.xlu0.b32.cont [12/16] %v1743, 128
        %1829 = vxpose.xlu0.b32.cont [13/16] %v1745, 128
        %1830 = vxpose.xlu0.b32.cont [14/16] %v1747, 128
        %1831 = vxpose.xlu0.b32.cont [15/16] %v1749, 128
        %1832 = vxpose.xlu0.b32.end [16/16] %v1751, 128
        %v1833 = vpop.trf.xlu0
        %v1834 = vpop.trf.xlu0
        %v1835 = vpop.trf.xlu0
        %v1836 = vpop.trf.xlu0
        %v1837 = vpop.trf.xlu0
        %v1838 = vpop.trf.xlu0
        %v1839 = vpop.trf.xlu0
        %v1840 = vpop.trf.xlu0
        %v1841 = vpop.trf.xlu0
        %v1842 = vpop.trf.xlu0
        %v1843 = vpop.trf.xlu0
        %v1844 = vpop.trf.xlu0
        %v1845 = vpop.trf.xlu0
        %v1846 = vpop.trf.xlu0
        %v1847 = vpop.trf.xlu0
        %v1848 = vpop.trf.xlu0
        %1849 = vxpose.xlu0.b32.start [1/16] %v1722, 128
        %1850 = vxpose.xlu0.b32.cont [2/16] %v1724, 128
        %1851 = vxpose.xlu0.b32.cont [3/16] %v1726, 128
        %1852 = vxpose.xlu0.b32.cont [4/16] %v1728, 128
        %1853 = vxpose.xlu0.b32.cont [5/16] %v1730, 128
        %1854 = vxpose.xlu0.b32.cont [6/16] %v1732, 128
        %1855 = vxpose.xlu0.b32.cont [7/16] %v1734, 128
        %1856 = vxpose.xlu0.b32.cont [8/16] %v1736, 128
        %1857 = vxpose.xlu0.b32.cont [9/16] %v1738, 128
        %1858 = vxpose.xlu0.b32.cont [10/16] %v1740, 128
        %1859 = vxpose.xlu0.b32.cont [11/16] %v1742, 128
        %1860 = vxpose.xlu0.b32.cont [12/16] %v1744, 128
        %1861 = vxpose.xlu0.b32.cont [13/16] %v1746, 128
        %1862 = vxpose.xlu0.b32.cont [14/16] %v1748, 128
        %1863 = vxpose.xlu0.b32.cont [15/16] %v1750, 128
        %1864 = vxpose.xlu0.b32.end [16/16] %v1752, 128
        %v1865 = vpop.trf.xlu0
        %v1866 = vpop.trf.xlu0
        %v1867 = vpop.trf.xlu0
        %v1868 = vpop.trf.xlu0
        %v1869 = vpop.trf.xlu0
        %v1870 = vpop.trf.xlu0
        %v1871 = vpop.trf.xlu0
        %v1872 = vpop.trf.xlu0
        %v1873 = vpop.trf.xlu0
        %v1874 = vpop.trf.xlu0
        %v1875 = vpop.trf.xlu0
        %v1876 = vpop.trf.xlu0
        %v1877 = vpop.trf.xlu0
        %v1878 = vpop.trf.xlu0
        %v1879 = vpop.trf.xlu0
        %v1880 = vpop.trf.xlu0
        %1881 = vst [vmem:[%s327] sm:$0xff] %v1769
        %1882 = vst [vmem:[%s327 + $0x8] sm:$0xff] %v1833
        %1883 = vst [vmem:[%s327 + $0x10] sm:$0xff] %v1770
        %1884 = vst [vmem:[%s327 + $0x18] sm:$0xff] %v1834
        %1885 = vst [vmem:[%s327 + $0x20] sm:$0xff] %v1771
        %1886 = vst [vmem:[%s327 + $0x28] sm:$0xff] %v1835
        %1887 = vst [vmem:[%s327 + $0x30] sm:$0xff] %v1772
        %1888 = vst [vmem:[%s327 + $0x38] sm:$0xff] %v1836
        %1889 = vst [vmem:[%s327 + $0x40] sm:$0xff] %v1773
        %1890 = vst [vmem:[%s327 + $0x48] sm:$0xff] %v1837
        %1891 = vst [vmem:[%s327 + $0x50] sm:$0xff] %v1774
        %1892 = vst [vmem:[%s327 + $0x58] sm:$0xff] %v1838
        %1893 = vst [vmem:[%s327 + $0x60] sm:$0xff] %v1775
        %1894 = vst [vmem:[%s327 + $0x68] sm:$0xff] %v1839
        %1895 = vst [vmem:[%s327 + $0x70] sm:$0xff] %v1776
        %1896 = vst [vmem:[%s327 + $0x78] sm:$0xff] %v1840
        %1897 = vst [vmem:[%s327 + $0x80] sm:$0xff] %v1777
        %1898 = vst [vmem:[%s327 + $0x88] sm:$0xff] %v1841
        %1899 = vst [vmem:[%s327 + $0x90] sm:$0xff] %v1778
        %1900 = vst [vmem:[%s327 + $0x98] sm:$0xff] %v1842
        %1901 = vst [vmem:[%s327 + $0xa0] sm:$0xff] %v1779
        %1902 = vst [vmem:[%s327 + $0xa8] sm:$0xff] %v1843
        %1903 = vst [vmem:[%s327 + $0xb0] sm:$0xff] %v1780
        %1904 = vst [vmem:[%s327 + $0xb8] sm:$0xff] %v1844
        %1905 = vst [vmem:[%s327 + $0xc0] sm:$0xff] %v1781
        %1906 = vst [vmem:[%s327 + $0xc8] sm:$0xff] %v1845
        %1907 = vst [vmem:[%s327 + $0xd0] sm:$0xff] %v1782
        %1908 = vst [vmem:[%s327 + $0xd8] sm:$0xff] %v1846
        %1909 = vst [vmem:[%s327 + $0xe0] sm:$0xff] %v1783
        %1910 = vst [vmem:[%s327 + $0xe8] sm:$0xff] %v1847
        %1911 = vst [vmem:[%s327 + $0xf0] sm:$0xff] %v1784
        %1912 = vst [vmem:[%s327 + $0xf8] sm:$0xff] %v1848
        %1913 = vst [vmem:[%s327 + $0x100] sm:$0xff] %v1801
        %1914 = vst [vmem:[%s327 + $0x108] sm:$0xff] %v1865
        %1915 = vst [vmem:[%s327 + $0x110] sm:$0xff] %v1802
        %1916 = vst [vmem:[%s327 + $0x118] sm:$0xff] %v1866
        %1917 = vst [vmem:[%s327 + $0x120] sm:$0xff] %v1803
        %1918 = vst [vmem:[%s327 + $0x128] sm:$0xff] %v1867
        %1919 = vst [vmem:[%s327 + $0x130] sm:$0xff] %v1804
        %1920 = vst [vmem:[%s327 + $0x138] sm:$0xff] %v1868
        %1921 = vst [vmem:[%s327 + $0x140] sm:$0xff] %v1805
        %1922 = vst [vmem:[%s327 + $0x148] sm:$0xff] %v1869
        %1923 = vst [vmem:[%s327 + $0x150] sm:$0xff] %v1806
        %1924 = vst [vmem:[%s327 + $0x158] sm:$0xff] %v1870
        %1925 = vst [vmem:[%s327 + $0x160] sm:$0xff] %v1807
        %1926 = vst [vmem:[%s327 + $0x168] sm:$0xff] %v1871
        %1927 = vst [vmem:[%s327 + $0x170] sm:$0xff] %v1808
        %1928 = vst [vmem:[%s327 + $0x178] sm:$0xff] %v1872
        %1929 = vst [vmem:[%s327 + $0x180] sm:$0xff] %v1809
        %1930 = vst [vmem:[%s327 + $0x188] sm:$0xff] %v1873
        %1931 = vst [vmem:[%s327 + $0x190] sm:$0xff] %v1810
        %1932 = vst [vmem:[%s327 + $0x198] sm:$0xff] %v1874
        %1933 = vst [vmem:[%s327 + $0x1a0] sm:$0xff] %v1811
        %1934 = vst [vmem:[%s327 + $0x1a8] sm:$0xff] %v1875
        %1935 = vst [vmem:[%s327 + $0x1b0] sm:$0xff] %v1812
        %1936 = vst [vmem:[%s327 + $0x1b8] sm:$0xff] %v1876
        %1937 = vst [vmem:[%s327 + $0x1c0] sm:$0xff] %v1813
        %1938 = vst [vmem:[%s327 + $0x1c8] sm:$0xff] %v1877
        %1939 = vst [vmem:[%s327 + $0x1d0] sm:$0xff] %v1814
        %1940 = vst [vmem:[%s327 + $0x1d8] sm:$0xff] %v1878
        %1941 = vst [vmem:[%s327 + $0x1e0] sm:$0xff] %v1815
        %1942 = vst [vmem:[%s327 + $0x1e8] sm:$0xff] %v1879
        %1943 = vst [vmem:[%s327 + $0x1f0] sm:$0xff] %v1816
        %1944 = vst [vmem:[%s327 + $0x1f8] sm:$0xff] %v1880
        %1945 = vxpose.xlu0.b32.start [1/16] %v1625, 128
        %1946 = vxpose.xlu0.b32.cont [2/16] %v1627, 128
        %1947 = vxpose.xlu0.b32.cont [3/16] %v1629, 128
        %1948 = vxpose.xlu0.b32.cont [4/16] %v1631, 128
        %1949 = vxpose.xlu0.b32.cont [5/16] %v1633, 128
        %1950 = vxpose.xlu0.b32.cont [6/16] %v1635, 128
        %1951 = vxpose.xlu0.b32.cont [7/16] %v1637, 128
        %1952 = vxpose.xlu0.b32.cont [8/16] %v1639, 128
        %1953 = vxpose.xlu0.b32.cont [9/16] %v1641, 128
        %1954 = vxpose.xlu0.b32.cont [10/16] %v1643, 128
        %1955 = vxpose.xlu0.b32.cont [11/16] %v1645, 128
        %1956 = vxpose.xlu0.b32.cont [12/16] %v1647, 128
        %1957 = vxpose.xlu0.b32.cont [13/16] %v1649, 128
        %1958 = vxpose.xlu0.b32.cont [14/16] %v1651, 128
        %1959 = vxpose.xlu0.b32.cont [15/16] %v1653, 128
        %1960 = vxpose.xlu0.b32.end [16/16] %v1655, 128
        %v1961 = vpop.trf.xlu0
        %v1962 = vpop.trf.xlu0
        %v1963 = vpop.trf.xlu0
        %v1964 = vpop.trf.xlu0
        %v1965 = vpop.trf.xlu0
        %v1966 = vpop.trf.xlu0
        %v1967 = vpop.trf.xlu0
        %v1968 = vpop.trf.xlu0
        %v1969 = vpop.trf.xlu0
        %v1970 = vpop.trf.xlu0
        %v1971 = vpop.trf.xlu0
        %v1972 = vpop.trf.xlu0
        %v1973 = vpop.trf.xlu0
        %v1974 = vpop.trf.xlu0
        %v1975 = vpop.trf.xlu0
        %v1976 = vpop.trf.xlu0
        %1977 = vxpose.xlu0.b32.start [1/16] %v1626, 128
        %1978 = vxpose.xlu0.b32.cont [2/16] %v1628, 128
        %1979 = vxpose.xlu0.b32.cont [3/16] %v1630, 128
        %1980 = vxpose.xlu0.b32.cont [4/16] %v1632, 128
        %1981 = vxpose.xlu0.b32.cont [5/16] %v1634, 128
        %1982 = vxpose.xlu0.b32.cont [6/16] %v1636, 128
        %1983 = vxpose.xlu0.b32.cont [7/16] %v1638, 128
        %1984 = vxpose.xlu0.b32.cont [8/16] %v1640, 128
        %1985 = vxpose.xlu0.b32.cont [9/16] %v1642, 128
        %1986 = vxpose.xlu0.b32.cont [10/16] %v1644, 128
        %1987 = vxpose.xlu0.b32.cont [11/16] %v1646, 128
        %1988 = vxpose.xlu0.b32.cont [12/16] %v1648, 128
        %1989 = vxpose.xlu0.b32.cont [13/16] %v1650, 128
        %1990 = vxpose.xlu0.b32.cont [14/16] %v1652, 128
        %1991 = vxpose.xlu0.b32.cont [15/16] %v1654, 128
        %1992 = vxpose.xlu0.b32.end [16/16] %v1656, 128
        %v1993 = vpop.trf.xlu0
        %v1994 = vpop.trf.xlu0
        %v1995 = vpop.trf.xlu0
        %v1996 = vpop.trf.xlu0
        %v1997 = vpop.trf.xlu0
        %v1998 = vpop.trf.xlu0
        %v1999 = vpop.trf.xlu0
        %v2000 = vpop.trf.xlu0
        %v2001 = vpop.trf.xlu0
        %v2002 = vpop.trf.xlu0
        %v2003 = vpop.trf.xlu0
        %v2004 = vpop.trf.xlu0
        %v2005 = vpop.trf.xlu0
        %v2006 = vpop.trf.xlu0
        %v2007 = vpop.trf.xlu0
        %v2008 = vpop.trf.xlu0
        %2009 = vxpose.xlu0.b32.start [1/16] %v1657, 128
        %2010 = vxpose.xlu0.b32.cont [2/16] %v1659, 128
        %2011 = vxpose.xlu0.b32.cont [3/16] %v1661, 128
        %2012 = vxpose.xlu0.b32.cont [4/16] %v1663, 128
        %2013 = vxpose.xlu0.b32.cont [5/16] %v1665, 128
        %2014 = vxpose.xlu0.b32.cont [6/16] %v1667, 128
        %2015 = vxpose.xlu0.b32.cont [7/16] %v1669, 128
        %2016 = vxpose.xlu0.b32.cont [8/16] %v1671, 128
        %2017 = vxpose.xlu0.b32.cont [9/16] %v1673, 128
        %2018 = vxpose.xlu0.b32.cont [10/16] %v1675, 128
        %2019 = vxpose.xlu0.b32.cont [11/16] %v1677, 128
        %2020 = vxpose.xlu0.b32.cont [12/16] %v1679, 128
        %2021 = vxpose.xlu0.b32.cont [13/16] %v1681, 128
        %2022 = vxpose.xlu0.b32.cont [14/16] %v1683, 128
        %2023 = vxpose.xlu0.b32.cont [15/16] %v1685, 128
        %2024 = vxpose.xlu0.b32.end [16/16] %v1687, 128
        %v2025 = vpop.trf.xlu0
        %v2026 = vpop.trf.xlu0
        %v2027 = vpop.trf.xlu0
        %v2028 = vpop.trf.xlu0
        %v2029 = vpop.trf.xlu0
        %v2030 = vpop.trf.xlu0
        %v2031 = vpop.trf.xlu0
        %v2032 = vpop.trf.xlu0
        %v2033 = vpop.trf.xlu0
        %v2034 = vpop.trf.xlu0
        %v2035 = vpop.trf.xlu0
        %v2036 = vpop.trf.xlu0
        %v2037 = vpop.trf.xlu0
        %v2038 = vpop.trf.xlu0
        %v2039 = vpop.trf.xlu0
        %v2040 = vpop.trf.xlu0
        %2041 = vxpose.xlu0.b32.start [1/16] %v1658, 128
        %2042 = vxpose.xlu0.b32.cont [2/16] %v1660, 128
        %2043 = vxpose.xlu0.b32.cont [3/16] %v1662, 128
        %2044 = vxpose.xlu0.b32.cont [4/16] %v1664, 128
        %2045 = vxpose.xlu0.b32.cont [5/16] %v1666, 128
        %2046 = vxpose.xlu0.b32.cont [6/16] %v1668, 128
        %2047 = vxpose.xlu0.b32.cont [7/16] %v1670, 128
        %2048 = vxpose.xlu0.b32.cont [8/16] %v1672, 128
        %2049 = vxpose.xlu0.b32.cont [9/16] %v1674, 128
        %2050 = vxpose.xlu0.b32.cont [10/16] %v1676, 128
        %2051 = vxpose.xlu0.b32.cont [11/16] %v1678, 128
        %2052 = vxpose.xlu0.b32.cont [12/16] %v1680, 128
        %2053 = vxpose.xlu0.b32.cont [13/16] %v1682, 128
        %2054 = vxpose.xlu0.b32.cont [14/16] %v1684, 128
        %2055 = vxpose.xlu0.b32.cont [15/16] %v1686, 128
        %2056 = vxpose.xlu0.b32.end [16/16] %v1688, 128
        %v2057 = vpop.trf.xlu0
        %v2058 = vpop.trf.xlu0
        %v2059 = vpop.trf.xlu0
        %v2060 = vpop.trf.xlu0
        %v2061 = vpop.trf.xlu0
        %v2062 = vpop.trf.xlu0
        %v2063 = vpop.trf.xlu0
        %v2064 = vpop.trf.xlu0
        %v2065 = vpop.trf.xlu0
        %v2066 = vpop.trf.xlu0
        %v2067 = vpop.trf.xlu0
        %v2068 = vpop.trf.xlu0
        %v2069 = vpop.trf.xlu0
        %v2070 = vpop.trf.xlu0
        %v2071 = vpop.trf.xlu0
        %v2072 = vpop.trf.xlu0
        %2073 = vst [vmem:[%s334] sm:$0xff] %v1961
        %2074 = vst [vmem:[%s334 + $0x8] sm:$0xff] %v2025
        %2075 = vst [vmem:[%s334 + $0x10] sm:$0xff] %v1962
        %2076 = vst [vmem:[%s334 + $0x18] sm:$0xff] %v2026
        %2077 = vst [vmem:[%s334 + $0x20] sm:$0xff] %v1963
        %2078 = vst [vmem:[%s334 + $0x28] sm:$0xff] %v2027
        %2079 = vst [vmem:[%s334 + $0x30] sm:$0xff] %v1964
        %2080 = vst [vmem:[%s334 + $0x38] sm:$0xff] %v2028
        %2081 = vst [vmem:[%s334 + $0x40] sm:$0xff] %v1965
        %2082 = vst [vmem:[%s334 + $0x48] sm:$0xff] %v2029
        %2083 = vst [vmem:[%s334 + $0x50] sm:$0xff] %v1966
        %2084 = vst [vmem:[%s334 + $0x58] sm:$0xff] %v2030
        %2085 = vst [vmem:[%s334 + $0x60] sm:$0xff] %v1967
        %2086 = vst [vmem:[%s334 + $0x68] sm:$0xff] %v2031
        %2087 = vst [vmem:[%s334 + $0x70] sm:$0xff] %v1968
        %2088 = vst [vmem:[%s334 + $0x78] sm:$0xff] %v2032
        %2089 = vst [vmem:[%s334 + $0x80] sm:$0xff] %v1969
        %2090 = vst [vmem:[%s334 + $0x88] sm:$0xff] %v2033
        %2091 = vst [vmem:[%s334 + $0x90] sm:$0xff] %v1970
        %2092 = vst [vmem:[%s334 + $0x98] sm:$0xff] %v2034
        %2093 = vst [vmem:[%s334 + $0xa0] sm:$0xff] %v1971
        %2094 = vst [vmem:[%s334 + $0xa8] sm:$0xff] %v2035
        %2095 = vst [vmem:[%s334 + $0xb0] sm:$0xff] %v1972
        %2096 = vst [vmem:[%s334 + $0xb8] sm:$0xff] %v2036
        %2097 = vst [vmem:[%s334 + $0xc0] sm:$0xff] %v1973
        %2098 = vst [vmem:[%s334 + $0xc8] sm:$0xff] %v2037
        %2099 = vst [vmem:[%s334 + $0xd0] sm:$0xff] %v1974
        %2100 = vst [vmem:[%s334 + $0xd8] sm:$0xff] %v2038
        %2101 = vst [vmem:[%s334 + $0xe0] sm:$0xff] %v1975
        %2102 = vst [vmem:[%s334 + $0xe8] sm:$0xff] %v2039
        %2103 = vst [vmem:[%s334 + $0xf0] sm:$0xff] %v1976
        %2104 = vst [vmem:[%s334 + $0xf8] sm:$0xff] %v2040
        %2105 = vst [vmem:[%s334 + $0x100] sm:$0xff] %v1993
        %2106 = vst [vmem:[%s334 + $0x108] sm:$0xff] %v2057
        %2107 = vst [vmem:[%s334 + $0x110] sm:$0xff] %v1994
        %2108 = vst [vmem:[%s334 + $0x118] sm:$0xff] %v2058
        %2109 = vst [vmem:[%s334 + $0x120] sm:$0xff] %v1995
        %2110 = vst [vmem:[%s334 + $0x128] sm:$0xff] %v2059
        %2111 = vst [vmem:[%s334 + $0x130] sm:$0xff] %v1996
        %2112 = vst [vmem:[%s334 + $0x138] sm:$0xff] %v2060
        %2113 = vst [vmem:[%s334 + $0x140] sm:$0xff] %v1997
        %2114 = vst [vmem:[%s334 + $0x148] sm:$0xff] %v2061
        %2115 = vst [vmem:[%s334 + $0x150] sm:$0xff] %v1998
        %2116 = vst [vmem:[%s334 + $0x158] sm:$0xff] %v2062
        %2117 = vst [vmem:[%s334 + $0x160] sm:$0xff] %v1999
        %2118 = vst [vmem:[%s334 + $0x168] sm:$0xff] %v2063
        %2119 = vst [vmem:[%s334 + $0x170] sm:$0xff] %v2000
        %2120 = vst [vmem:[%s334 + $0x178] sm:$0xff] %v2064
        %2121 = vst [vmem:[%s334 + $0x180] sm:$0xff] %v2001
        %2122 = vst [vmem:[%s334 + $0x188] sm:$0xff] %v2065
        %2123 = vst [vmem:[%s334 + $0x190] sm:$0xff] %v2002
        %2124 = vst [vmem:[%s334 + $0x198] sm:$0xff] %v2066
        %2125 = vst [vmem:[%s334 + $0x1a0] sm:$0xff] %v2003
        %2126 = vst [vmem:[%s334 + $0x1a8] sm:$0xff] %v2067
        %2127 = vst [vmem:[%s334 + $0x1b0] sm:$0xff] %v2004
        %2128 = vst [vmem:[%s334 + $0x1b8] sm:$0xff] %v2068
        %2129 = vst [vmem:[%s334 + $0x1c0] sm:$0xff] %v2005
        %2130 = vst [vmem:[%s334 + $0x1c8] sm:$0xff] %v2069
        %2131 = vst [vmem:[%s334 + $0x1d0] sm:$0xff] %v2006
        %2132 = vst [vmem:[%s334 + $0x1d8] sm:$0xff] %v2070
        %2133 = vst [vmem:[%s334 + $0x1e0] sm:$0xff] %v2007
        %2134 = vst [vmem:[%s334 + $0x1e8] sm:$0xff] %v2071
        %2135 = vst [vmem:[%s334 + $0x1f0] sm:$0xff] %v2008
        %2136 = vst [vmem:[%s334 + $0x1f8] sm:$0xff] %v2072
        %s2137 = sand.u32 %s134, 1
        %s2138 = scalar_lea.sflag [#allocation4], %s2137
        %s2139 = sand.u32 %s134, 1
        %s2140 = smul.addr %s2139, 512
        %s2141 = scalar_lea.vmem [#allocation8], %s2140
        %s2142 = sand.u32 %s162, 1
        %s2143 = scalar_lea.sflag [#allocation10], %s2142
        %s2144 = sand.u32 %s162, 1
        %s2145 = smul.addr %s2144, 512
        %s2146 = scalar_lea.vmem [#allocation9], %s2145
        // Predicated region
        $region45: #{tpu_custom_call.1} parent=31 // pred_check
          %p2147 = pneg %p144
        $region46: #{tpu_custom_call.1} parent=31 // pred_check_branch
          %2149 = sbr.rel (%p2147) target = $region48
        $region47: #{tpu_custom_call.1} parent=31 // pred_region
          %s2150 = smul.u32 32, %s33
          %s2151 = smul.u32 2, %s32
          %s2153 = ssub.s32 8192, 8192
          %2154 = vsyncadd %s2138, %s2153
          %s2155 = smul.addr %s2150, 2
          %s2156 = sadd.s32 %s2151, %s2155
          %s2157 = smul.addr %s2156, 128
          %s2158 = scalar_lea.hbm %s3, %s2157
          %s2159 = sshll.u32 %s2141, 4
          %s2160 = int_to_ptr.vmem [resolvable:$true] %s2159
          %2165 = dma.vmem_to_hbm [thread:$0]  %s2160, 8192, %s2158, %s2138, 256, 256, 16
        $region48: #{tpu_custom_call.1} parent=31 // pred_fallthru
          _
        // Predicated region
        $region49: #{tpu_custom_call.1} parent=31 // pred_check
          %p2166 = pneg %p172
        $region50: #{tpu_custom_call.1} parent=31 // pred_check_branch
          %2168 = sbr.rel (%p2166) target = $region52
        $region51: #{tpu_custom_call.1} parent=31 // pred_region
          %s2169 = smul.u32 32, %s33
          %s2170 = smul.u32 2, %s32
          %s2172 = ssub.s32 8192, 8192
          %2173 = vsyncadd %s2143, %s2172
          %s2174 = smul.addr %s2169, 2
          %s2175 = sadd.s32 %s2170, %s2174
          %s2176 = smul.addr %s2175, 128
          %s2177 = scalar_lea.hbm %s4, %s2176
          %s2178 = sshll.u32 %s2146, 4
          %s2179 = int_to_ptr.vmem [resolvable:$true] %s2178
          %2184 = dma.vmem_to_hbm [thread:$0]  %s2179, 8192, %s2177, %s2143, 256, 256, 16
        $region52: #{tpu_custom_call.1} parent=31 // pred_fallthru
          _
      $region32: #{tpu_custom_call.1} parent=5 // pred_fallthru
        _
      %p2185 = scmp.le.s32.totalorder 2, %s23
      // Predicated region
      $region53: #{tpu_custom_call.1} parent=5 // pred_check
        %p2186 = pneg %p2185
      $region54: #{tpu_custom_call.1} parent=5 // pred_check_branch
        %2188 = sbr.rel (%p2186) target = $region56
      $region55: #{tpu_custom_call.1} parent=5 // pred_region
        %s2189 = ssub.s32 %s23, 2
        // Predicated region
        $region57: #{tpu_custom_call.1} parent=55 // pred_check
          %p2190 = pneg %p150
        $region58: #{tpu_custom_call.1} parent=55 // pred_check_branch
          %2192 = sbr.rel (%p2190) target = $region60
        $region59: #{tpu_custom_call.1} parent=55 // pred_region
          %s2193 = sand.u32 %s135, 1
          %s2194 = scalar_lea.sflag [#allocation4], %s2193
          %s2195 = sand.u32 %s135, 1
          %s2196 = smul.addr %s2195, 512
          %s2197 = scalar_lea.vmem [#allocation8], %s2196
          %2198 = dma.done %s2194, 8192
        $region60: #{tpu_custom_call.1} parent=55 // pred_fallthru
          _
        // Predicated region
        $region61: #{tpu_custom_call.1} parent=55 // pred_check
          %p2199 = pneg %p178
        $region62: #{tpu_custom_call.1} parent=55 // pred_check_branch
          %2201 = sbr.rel (%p2199) target = $region64
        $region63: #{tpu_custom_call.1} parent=55 // pred_region
          %s2202 = sand.u32 %s163, 1
          %s2203 = scalar_lea.sflag [#allocation10], %s2202
          %s2204 = sand.u32 %s163, 1
          %s2205 = smul.addr %s2204, 512
          %s2206 = scalar_lea.vmem [#allocation9], %s2205
          %2207 = dma.done %s2203, 8192
        $region64: #{tpu_custom_call.1} parent=55 // pred_fallthru
          _
      $region56: #{tpu_custom_call.1} parent=5 // pred_fallthru
        _
    $region6: #{tpu_custom_call.1} parent=1 // loop_footer
      %s27 = sadd.s32 1, %s23
    $region7: #{tpu_custom_call.1} parent=1 // loop_footer_branch
      %22 = sbr.rel target = $region3
    $region8: #{tpu_custom_call.1} parent=1 // loop_exit
      _
    %2208 = vsyncpa [#allocation3], 1
    %s2209 = scalar_lea.sflag [#allocation3], 1
    %2210 = vsyncpa %s2209, 1
    %2211 = vsyncpa [#allocation6], 1
    %s2212 = scalar_lea.sflag [#allocation6], 1
    %2213 = vsyncpa %s2212, 1
    %2214 = vsyncpa [#allocation4], 1
    %s2215 = scalar_lea.sflag [#allocation4], 1
    %2216 = vsyncpa %s2215, 1
    %2217 = vsyncpa [#allocation10], 1
    %s2218 = scalar_lea.sflag [#allocation10], 1
    %2219 = vsyncpa %s2218, 1

</llo_original>
